<compile_context>
chip_gen: v7x
topology: tpu7x:2x2x1
jax: 0.10.0
libtpu: 0.0.40
codegen_flags: <defaults>
</compile_context>

<pallas_src>
import functools

import jax
import jax.numpy as jnp
from jax import lax
from jax.experimental import pallas as pl
from jax.experimental.pallas import tpu as pltpu


def _decoder_kernel(
    z_ref,      # (T*B, Z)   latents, time-major flattened
    eps_ref,    # (T*B, X)   reparameterization noise, time-major flattened
    w_ih_ref,   # (Z, 3H)    GRU input weights (pre-transposed)
    w_hh_ref,   # (H, 3H)    GRU hidden weights (pre-transposed)
    b_ih_ref,   # (1, 3H)
    b_hh_ref,   # (1, 3H)
    w1_ref,     # (H, D)     phi_dec linear (pre-transposed)
    b1_ref,     # (1, D)
    w23_ref,    # (D, 2X)    fused [dec_means | dec_stds] weights (pre-transposed)
    b23_ref,    # (1, 2X)
    out_ref,    # (T*B, 3X)  fused output [x_sample | mean | std]
    gi_ref,     # scratch (T, B, 3H) f32 — hoisted input projection, all steps
    hs_ref,     # scratch (T, B, H)  f32 — GRU hidden states, all steps
    *,
    t_len: int,
    batch: int,
    h_dim: int,
    x_dim: int,
):
    T, B, H, X = t_len, batch, h_dim, x_dim

    # ---- hoisted input projection: one matmul covers every timestep ----
    z_all = z_ref[...].astype(jnp.float32)                        # (T*B, Z)
    gi_all = (
        jnp.dot(z_all, w_ih_ref[...], preferred_element_type=jnp.float32)
        + b_ih_ref[...]
    )                                                             # (T*B, 3H)
    gi_ref[...] = gi_all.reshape(T, B, 3 * H)

    w_hh = w_hh_ref[...].astype(jnp.float32)                      # (H, 3H)
    # Hoist the bias broadcast out of the loop (JAX does not CSE broadcasts).
    gh_bias = jnp.broadcast_to(b_hh_ref[...], (B, 3 * H))

    # ---- sequential GRU recurrence: only gh = h @ W_hh is truly serial ----
    def step(t, h):
        gi = gi_ref[t]                                            # (B, 3H)
        gh = jnp.dot(h, w_hh, preferred_element_type=jnp.float32) + gh_bias
        r = jax.nn.sigmoid(gi[:, 0:H] + gh[:, 0:H])
        zg = jax.nn.sigmoid(gi[:, H:2 * H] + gh[:, H:2 * H])
        # PyTorch GRUCell: n = tanh(W_in x + b_in + r * (W_hn h + b_hn))
        n = jnp.tanh(gi[:, 2 * H:3 * H] + r * gh[:, 2 * H:3 * H])
        h_new = (1.0 - zg) * n + zg * h
        hs_ref[t] = h_new
        return h_new

    h0 = jnp.zeros((B, H), jnp.float32)
    lax.fori_loop(0, T, step, h0, unroll=True)

    # ---- batched decoder head over all timesteps at once ----
    h_all = hs_ref[...].reshape(T * B, H)                         # (T*B, H)
    phi = jnp.maximum(
        jnp.dot(h_all, w1_ref[...], preferred_element_type=jnp.float32)
        + b1_ref[...],
        0.0,
    )                                                             # (T*B, D)
    head = (
        jnp.dot(phi, w23_ref[...], preferred_element_type=jnp.float32)
        + b23_ref[...]
    )                                                             # (T*B, 2X)
    mean = jax.nn.sigmoid(head[:, 0:X])
    std = jax.nn.softplus(head[:, X:2 * X])
    eps = eps_ref[...].astype(jnp.float32)
    x_samp = eps * std + mean

    # single fused, lane-packed store
    out_ref[...] = jnp.concatenate([x_samp, mean, std], axis=-1).astype(out_ref.dtype)


def decoder_forward(z, eps, params):
    """z: [B, T, z_dim] (PyTorch layout), eps: [B, T, x_dim].
    Returns (xs, means, stds) each [B, T, x_dim]."""
    B, T, Z = z.shape
    X = eps.shape[-1]
    H = params["w_hh"].shape[1]       # w_hh: (3H, H)  -> hidden size
    D = params["w1"].shape[0]         # w1:   (D, H)   -> dense size

    # time-major, flattened to lane-friendly 2-D slabs
    z_tm = jnp.transpose(z, (1, 0, 2)).reshape(T * B, Z).astype(jnp.float32)
    eps_tm = jnp.transpose(eps, (1, 0, 2)).reshape(T * B, X).astype(jnp.float32)

    # fused mean/std head: one (D, 2X) matmul instead of two (D, X) matmuls
    w23 = jnp.concatenate([params["w2"].T, params["w3"].T], axis=1)   # (D, 2X)
    b23 = jnp.concatenate([params["b2"], params["b3"]])[None, :]      # (1, 2X)

    kernel = functools.partial(
        _decoder_kernel, t_len=T, batch=B, h_dim=H, x_dim=X
    )

    vmem_spec = pl.BlockSpec(memory_space=pltpu.MemorySpace.VMEM)

    fused = pl.pallas_call(
        kernel,
        out_shape=jax.ShapeDtypeStruct((T * B, 3 * X), jnp.float32),
        in_specs=[vmem_spec] * 10,
        out_specs=vmem_spec,
        scratch_shapes=[
            pltpu.VMEM((T, B, 3 * H), jnp.float32),   # hoisted gi for all steps
            pltpu.VMEM((T, B, H), jnp.float32),       # hidden states for all steps
        ],
    )(
        z_tm, eps_tm,
        params["w_ih"].T, params["w_hh"].T,
        params["b_ih"][None, :], params["b_hh"][None, :],
        params["w1"].T, params["b1"][None, :],
        w23, b23,
    )

    fused = fused.reshape(T, B, 3 * X)
    xs_tm = fused[..., 0:X]
    means_tm = fused[..., X:2 * X]
    stds_tm = fused[..., 2 * X:3 * X]

    # .permute(1, 0, 2) equivalent: time-major -> batch-major
    perm = lambda a: jnp.transpose(a, (1, 0, 2))
    return perm(xs_tm), perm(means_tm), perm(stds_tm)


def make_params(key, x_dim, h_dim, dense_dim, z_dim):
    """Deterministic parameter init (PyTorch-like uniform ranges)."""
    ks = jax.random.split(key, 10)
    u = lambda k, shape, bound: jax.random.uniform(
        k, shape, jnp.float32, -bound, bound
    )
    gru_bound = 1.0 / jnp.sqrt(h_dim)
    return {
        "w_ih": u(ks[0], (3 * h_dim, z_dim), gru_bound),
        "w_hh": u(ks[1], (3 * h_dim, h_dim), gru_bound),
        "b_ih": u(ks[2], (3 * h_dim,), gru_bound),
        "b_hh": u(ks[3], (3 * h_dim,), gru_bound),
        "w1": u(ks[4], (dense_dim, h_dim), 1.0 / jnp.sqrt(h_dim)),
        "b1": u(ks[5], (dense_dim,), 1.0 / jnp.sqrt(h_dim)),
        "w2": u(ks[6], (x_dim, dense_dim), 1.0 / jnp.sqrt(dense_dim)),
        "b2": u(ks[7], (x_dim,), 1.0 / jnp.sqrt(dense_dim)),
        "w3": u(ks[8], (x_dim, dense_dim), 1.0 / jnp.sqrt(dense_dim)),
        "b3": u(ks[9], (x_dim,), 1.0 / jnp.sqrt(dense_dim)),
    }


def reference_forward(z, eps, params):
    """Pure-JAX reference of the PyTorch Decoder.forward for validation."""
    B, T, _ = z.shape
    H = params["w_hh"].shape[1]       # w_hh: (3H, H)
    h = jnp.zeros((B, H), jnp.float32)
    xs, means, stds = [], [], []
    for t in range(T):
        x_t = z[:, t].astype(jnp.float32)
        gi = x_t @ params["w_ih"].T + params["b_ih"]
        gh = h @ params["w_hh"].T + params["b_hh"]
        r = jax.nn.sigmoid(gi[:, :H] + gh[:, :H])
        zg = jax.nn.sigmoid(gi[:, H:2 * H] + gh[:, H:2 * H])
        n = jnp.tanh(gi[:, 2 * H:] + r * gh[:, 2 * H:])
        h = (1.0 - zg) * n + zg * h
        phi = jax.nn.relu(h @ params["w1"].T + params["b1"])
        mean = jax.nn.sigmoid(phi @ params["w2"].T + params["b2"])
        std = jax.nn.softplus(phi @ params["w3"].T + params["b3"])
        xs.append(eps[:, t] * std + mean)
        means.append(mean)
        stds.append(std)
    stack = lambda lst: jnp.stack(lst, axis=1)
    return stack(xs), stack(means), stack(stds)


if __name__ == "__main__":
    # Small shapes consistent with the module's forward.
    x_dim, h_dim, dense_dim, z_dim, rolling_size = 16, 32, 32, 16, 8
    B, T = 8, rolling_size

    key = jax.random.PRNGKey(0)
    k_p, k_z, k_e = jax.random.split(key, 3)

    params = make_params(k_p, x_dim, h_dim, dense_dim, z_dim)
    z = jax.random.normal(k_z, (B, T, z_dim), jnp.float32)
    # eps ~ N(0,1): the torch module draws fresh normal noise each call;
    # here it is drawn deterministically outside the kernel so the Pallas
    # result can be compared exactly against the reference.
    eps = jax.random.normal(k_e, (B, T, x_dim), jnp.float32)

    xs, means, stds = decoder_forward(z, eps, params)
    jax.block_until_ready((xs, means, stds))

    xs_ref, means_ref, stds_ref = reference_forward(z, eps, params)
    assert xs.shape == (B, T, x_dim)
    assert means.shape == (B, T, x_dim)
    assert stds.shape == (B, T, x_dim)
    assert jnp.allclose(xs, xs_ref, atol=1e-4)
    assert jnp.allclose(means, means_ref, atol=1e-4)
    assert jnp.allclose(stds, stds_ref, atol=1e-4)

    print("KERNEL_OK")
</pallas_src>

<mosaic_0001>
module attributes {stable_mosaic.version = 11 : i64} {
  func.func @_decoder_kernel(%arg0: memref<64x16xf32, #tpu.memory_space<vmem>>, %arg1: memref<64x16xf32, #tpu.memory_space<vmem>>, %arg2: memref<16x96xf32, #tpu.memory_space<vmem>>, %arg3: memref<32x96xf32, #tpu.memory_space<vmem>>, %arg4: memref<1x96xf32, #tpu.memory_space<vmem>>, %arg5: memref<1x96xf32, #tpu.memory_space<vmem>>, %arg6: memref<32x32xf32, #tpu.memory_space<vmem>>, %arg7: memref<1x32xf32, #tpu.memory_space<vmem>>, %arg8: memref<32x32xf32, #tpu.memory_space<vmem>>, %arg9: memref<1x32xf32, #tpu.memory_space<vmem>>, %arg10: memref<64x48xf32, #tpu.memory_space<vmem>>, %arg11: memref<8x8x96xf32, #tpu.memory_space<vmem>>, %arg12: memref<8x8x32xf32, #tpu.memory_space<vmem>>) attributes {dimension_semantics = [], scalar_prefetch = 0 : i64, scratch_operands = 2 : i64, tpu.core_type = #tpu.core_type<tc>} {
    %c0 = arith.constant 0 : index
    %c0_0 = arith.constant 0 : index
    %0 = vector.load %arg0[%c0, %c0_0] : memref<64x16xf32, #tpu.memory_space<vmem>>, vector<64x16xf32>
    %c0_1 = arith.constant 0 : index
    %c0_2 = arith.constant 0 : index
    %1 = vector.load %arg2[%c0_1, %c0_2] : memref<16x96xf32, #tpu.memory_space<vmem>>, vector<16x96xf32>
    %cst = arith.constant dense<0.000000e+00> : vector<64x96xf32>
    %2 = tpu.matmul %0, %1, %cst {dimension_numbers = #tpu.dot_dimension_numbers<[1], [0], [0], [1], [0, 0, 1, 1], [], []>} : vector<64x16xf32>, vector<16x96xf32>, vector<64x96xf32> -> vector<64x96xf32>
    %c0_3 = arith.constant 0 : index
    %c0_4 = arith.constant 0 : index
    %3 = vector.load %arg4[%c0_3, %c0_4] : memref<1x96xf32, #tpu.memory_space<vmem>>, vector<1x96xf32>
    %4 = vector.broadcast %3 : vector<1x96xf32> to vector<64x96xf32>
    %5 = arith.addf %2, %4 : vector<64x96xf32>
    %6 = vector.shape_cast %5 : vector<64x96xf32> to vector<8x8x96xf32>
    %c0_5 = arith.constant 0 : index
    %c0_6 = arith.constant 0 : index
    %c0_7 = arith.constant 0 : index
    %7 = vector.load %arg11[%c0_5, %c0_6, %c0_7] : memref<8x8x96xf32, #tpu.memory_space<vmem>>, vector<8x8x96xf32>
    tpu.vector_store %arg11[%c0_5, %c0_6, %c0_7], %6 {strides = array<i32>} : memref<8x8x96xf32, #tpu.memory_space<vmem>>, vector<8x8x96xf32>,
    %c0_8 = arith.constant 0 : index
    %c0_9 = arith.constant 0 : index
    %8 = vector.load %arg3[%c0_8, %c0_9] : memref<32x96xf32, #tpu.memory_space<vmem>>, vector<32x96xf32>
    %c0_10 = arith.constant 0 : index
    %c0_11 = arith.constant 0 : index
    %9 = vector.load %arg5[%c0_10, %c0_11] : memref<1x96xf32, #tpu.memory_space<vmem>>, vector<1x96xf32>
    %10 = vector.shape_cast %9 : vector<1x96xf32> to vector<1x96xf32>
    %11 = vector.broadcast %10 : vector<1x96xf32> to vector<8x96xf32>
    %cst_12 = arith.constant 0.000000e+00 : f32
    %12 = vector.broadcast %cst_12 : f32 to vector<8x32xf32>
    %c0_i32 = arith.constant 0 : i32
    %13 = arith.index_cast %c0_i32 : i32 to index
    %c0_13 = arith.constant 0 : index
    %c0_14 = arith.constant 0 : index
    %14 = vector.load %arg11[%13, %c0_13, %c0_14] : memref<8x8x96xf32, #tpu.memory_space<vmem>>, vector<1x8x96xf32>
    %15 = vector.shape_cast %14 : vector<1x8x96xf32> to vector<8x96xf32>
    %cst_15 = arith.constant dense<0.000000e+00> : vector<8x96xf32>
    %16 = tpu.matmul %12, %8, %cst_15 {dimension_numbers = #tpu.dot_dimension_numbers<[1], [0], [0], [1], [0, 0, 1, 1], [], []>} : vector<8x32xf32>, vector<32x96xf32>, vector<8x96xf32> -> vector<8x96xf32>
    %17 = arith.addf %16, %11 : vector<8x96xf32>
    %18 = vector.extract_strided_slice %15 {offsets = [0, 0], sizes = [8, 32], strides = [1, 1]} : vector<8x96xf32> to vector<8x32xf32>
    %19 = vector.extract_strided_slice %17 {offsets = [0, 0], sizes = [8, 32], strides = [1, 1]} : vector<8x96xf32> to vector<8x32xf32>
    %20 = arith.addf %18, %19 : vector<8x32xf32>
    %21 = arith.negf %20 : vector<8x32xf32>
    %22 = math.exp %21 : vector<8x32xf32>
    %cst_16 = arith.constant 1.000000e+00 : f32
    %23 = vector.broadcast %cst_16 : f32 to vector<8x32xf32>
    %24 = arith.addf %23, %22 : vector<8x32xf32>
    %25 = arith.divf %23, %24 : vector<8x32xf32>
    %26 = vector.extract_strided_slice %15 {offsets = [0, 32], sizes = [8, 32], strides = [1, 1]} : vector<8x96xf32> to vector<8x32xf32>
    %27 = vector.extract_strided_slice %17 {offsets = [0, 32], sizes = [8, 32], strides = [1, 1]} : vector<8x96xf32> to vector<8x32xf32>
    %28 = arith.addf %26, %27 : vector<8x32xf32>
    %29 = arith.negf %28 : vector<8x32xf32>
    %30 = math.exp %29 : vector<8x32xf32>
    %cst_17 = arith.constant 1.000000e+00 : f32
    %31 = vector.broadcast %cst_17 : f32 to vector<8x32xf32>
    %32 = arith.addf %31, %30 : vector<8x32xf32>
    %33 = arith.divf %31, %32 : vector<8x32xf32>
    %34 = vector.extract_strided_slice %15 {offsets = [0, 64], sizes = [8, 32], strides = [1, 1]} : vector<8x96xf32> to vector<8x32xf32>
    %35 = vector.extract_strided_slice %17 {offsets = [0, 64], sizes = [8, 32], strides = [1, 1]} : vector<8x96xf32> to vector<8x32xf32>
    %36 = arith.mulf %25, %35 : vector<8x32xf32>
    %37 = arith.addf %34, %36 : vector<8x32xf32>
    %38 = math.tanh %37 : vector<8x32xf32>
    %cst_18 = arith.constant 1.000000e+00 : f32
    %39 = vector.broadcast %cst_18 : f32 to vector<8x32xf32>
    %40 = arith.subf %39, %33 : vector<8x32xf32>
    %41 = arith.mulf %40, %38 : vector<8x32xf32>
    %42 = arith.mulf %33, %12 : vector<8x32xf32>
    %43 = arith.addf %41, %42 : vector<8x32xf32>
    %44 = arith.index_cast %c0_i32 : i32 to index
    %c0_19 = arith.constant 0 : index
    %c0_20 = arith.constant 0 : index
    %45 = vector.load %arg12[%44, %c0_19, %c0_20] : memref<8x8x32xf32, #tpu.memory_space<vmem>>, vector<1x8x32xf32>
    %46 = vector.shape_cast %45 : vector<1x8x32xf32> to vector<8x32xf32>
    %47 = vector.shape_cast %43 : vector<8x32xf32> to vector<1x8x32xf32>
    tpu.vector_store %arg12[%44, %c0_19, %c0_20], %47 {strides = array<i32>} : memref<8x8x32xf32, #tpu.memory_space<vmem>>, vector<1x8x32xf32>,
    %c1_i32 = arith.constant 1 : i32
    %48 = arith.index_cast %c1_i32 : i32 to index
    %c0_21 = arith.constant 0 : index
    %c0_22 = arith.constant 0 : index
    %49 = vector.load %arg11[%48, %c0_21, %c0_22] : memref<8x8x96xf32, #tpu.memory_space<vmem>>, vector<1x8x96xf32>
    %50 = vector.shape_cast %49 : vector<1x8x96xf32> to vector<8x96xf32>
    %cst_23 = arith.constant dense<0.000000e+00> : vector<8x96xf32>
    %51 = tpu.matmul %43, %8, %cst_23 {dimension_numbers = #tpu.dot_dimension_numbers<[1], [0], [0], [1], [0, 0, 1, 1], [], []>} : vector<8x32xf32>, vector<32x96xf32>, vector<8x96xf32> -> vector<8x96xf32>
    %52 = arith.addf %51, %11 : vector<8x96xf32>
    %53 = vector.extract_strided_slice %50 {offsets = [0, 0], sizes = [8, 32], strides = [1, 1]} : vector<8x96xf32> to vector<8x32xf32>
    %54 = vector.extract_strided_slice %52 {offsets = [0, 0], sizes = [8, 32], strides = [1, 1]} : vector<8x96xf32> to vector<8x32xf32>
    %55 = arith.addf %53, %54 : vector<8x32xf32>
    %56 = arith.negf %55 : vector<8x32xf32>
    %57 = math.exp %56 : vector<8x32xf32>
    %cst_24 = arith.constant 1.000000e+00 : f32
    %58 = vector.broadcast %cst_24 : f32 to vector<8x32xf32>
    %59 = arith.addf %58, %57 : vector<8x32xf32>
    %60 = arith.divf %58, %59 : vector<8x32xf32>
    %61 = vector.extract_strided_slice %50 {offsets = [0, 32], sizes = [8, 32], strides = [1, 1]} : vector<8x96xf32> to vector<8x32xf32>
    %62 = vector.extract_strided_slice %52 {offsets = [0, 32], sizes = [8, 32], strides = [1, 1]} : vector<8x96xf32> to vector<8x32xf32>
    %63 = arith.addf %61, %62 : vector<8x32xf32>
    %64 = arith.negf %63 : vector<8x32xf32>
    %65 = math.exp %64 : vector<8x32xf32>
    %cst_25 = arith.constant 1.000000e+00 : f32
    %66 = vector.broadcast %cst_25 : f32 to vector<8x32xf32>
    %67 = arith.addf %66, %65 : vector<8x32xf32>
    %68 = arith.divf %66, %67 : vector<8x32xf32>
    %69 = vector.extract_strided_slice %50 {offsets = [0, 64], sizes = [8, 32], strides = [1, 1]} : vector<8x96xf32> to vector<8x32xf32>
    %70 = vector.extract_strided_slice %52 {offsets = [0, 64], sizes = [8, 32], strides = [1, 1]} : vector<8x96xf32> to vector<8x32xf32>
    %71 = arith.mulf %60, %70 : vector<8x32xf32>
    %72 = arith.addf %69, %71 : vector<8x32xf32>
    %73 = math.tanh %72 : vector<8x32xf32>
    %cst_26 = arith.constant 1.000000e+00 : f32
    %74 = vector.broadcast %cst_26 : f32 to vector<8x32xf32>
    %75 = arith.subf %74, %68 : vector<8x32xf32>
    %76 = arith.mulf %75, %73 : vector<8x32xf32>
    %77 = arith.mulf %68, %43 : vector<8x32xf32>
    %78 = arith.addf %76, %77 : vector<8x32xf32>
    %79 = arith.index_cast %c1_i32 : i32 to index
    %c0_27 = arith.constant 0 : index
    %c0_28 = arith.constant 0 : index
    %80 = vector.load %arg12[%79, %c0_27, %c0_28] : memref<8x8x32xf32, #tpu.memory_space<vmem>>, vector<1x8x32xf32>
    %81 = vector.shape_cast %80 : vector<1x8x32xf32> to vector<8x32xf32>
    %82 = vector.shape_cast %78 : vector<8x32xf32> to vector<1x8x32xf32>
    tpu.vector_store %arg12[%79, %c0_27, %c0_28], %82 {strides = array<i32>} : memref<8x8x32xf32, #tpu.memory_space<vmem>>, vector<1x8x32xf32>,
    %c2_i32 = arith.constant 2 : i32
    %83 = arith.index_cast %c2_i32 : i32 to index
    %c0_29 = arith.constant 0 : index
    %c0_30 = arith.constant 0 : index
    %84 = vector.load %arg11[%83, %c0_29, %c0_30] : memref<8x8x96xf32, #tpu.memory_space<vmem>>, vector<1x8x96xf32>
    %85 = vector.shape_cast %84 : vector<1x8x96xf32> to vector<8x96xf32>
    %cst_31 = arith.constant dense<0.000000e+00> : vector<8x96xf32>
    %86 = tpu.matmul %78, %8, %cst_31 {dimension_numbers = #tpu.dot_dimension_numbers<[1], [0], [0], [1], [0, 0, 1, 1], [], []>} : vector<8x32xf32>, vector<32x96xf32>, vector<8x96xf32> -> vector<8x96xf32>
    %87 = arith.addf %86, %11 : vector<8x96xf32>
    %88 = vector.extract_strided_slice %85 {offsets = [0, 0], sizes = [8, 32], strides = [1, 1]} : vector<8x96xf32> to vector<8x32xf32>
    %89 = vector.extract_strided_slice %87 {offsets = [0, 0], sizes = [8, 32], strides = [1, 1]} : vector<8x96xf32> to vector<8x32xf32>
    %90 = arith.addf %88, %89 : vector<8x32xf32>
    %91 = arith.negf %90 : vector<8x32xf32>
    %92 = math.exp %91 : vector<8x32xf32>
    %cst_32 = arith.constant 1.000000e+00 : f32
    %93 = vector.broadcast %cst_32 : f32 to vector<8x32xf32>
    %94 = arith.addf %93, %92 : vector<8x32xf32>
    %95 = arith.divf %93, %94 : vector<8x32xf32>
    %96 = vector.extract_strided_slice %85 {offsets = [0, 32], sizes = [8, 32], strides = [1, 1]} : vector<8x96xf32> to vector<8x32xf32>
    %97 = vector.extract_strided_slice %87 {offsets = [0, 32], sizes = [8, 32], strides = [1, 1]} : vector<8x96xf32> to vector<8x32xf32>
    %98 = arith.addf %96, %97 : vector<8x32xf32>
    %99 = arith.negf %98 : vector<8x32xf32>
    %100 = math.exp %99 : vector<8x32xf32>
    %cst_33 = arith.constant 1.000000e+00 : f32
    %101 = vector.broadcast %cst_33 : f32 to vector<8x32xf32>
    %102 = arith.addf %101, %100 : vector<8x32xf32>
    %103 = arith.divf %101, %102 : vector<8x32xf32>
    %104 = vector.extract_strided_slice %85 {offsets = [0, 64], sizes = [8, 32], strides = [1, 1]} : vector<8x96xf32> to vector<8x32xf32>
    %105 = vector.extract_strided_slice %87 {offsets = [0, 64], sizes = [8, 32], strides = [1, 1]} : vector<8x96xf32> to vector<8x32xf32>
    %106 = arith.mulf %95, %105 : vector<8x32xf32>
    %107 = arith.addf %104, %106 : vector<8x32xf32>
    %108 = math.tanh %107 : vector<8x32xf32>
    %cst_34 = arith.constant 1.000000e+00 : f32
    %109 = vector.broadcast %cst_34 : f32 to vector<8x32xf32>
    %110 = arith.subf %109, %103 : vector<8x32xf32>
    %111 = arith.mulf %110, %108 : vector<8x32xf32>
    %112 = arith.mulf %103, %78 : vector<8x32xf32>
    %113 = arith.addf %111, %112 : vector<8x32xf32>
    %114 = arith.index_cast %c2_i32 : i32 to index
    %c0_35 = arith.constant 0 : index
    %c0_36 = arith.constant 0 : index
    %115 = vector.load %arg12[%114, %c0_35, %c0_36] : memref<8x8x32xf32, #tpu.memory_space<vmem>>, vector<1x8x32xf32>
    %116 = vector.shape_cast %115 : vector<1x8x32xf32> to vector<8x32xf32>
    %117 = vector.shape_cast %113 : vector<8x32xf32> to vector<1x8x32xf32>
    tpu.vector_store %arg12[%114, %c0_35, %c0_36], %117 {strides = array<i32>} : memref<8x8x32xf32, #tpu.memory_space<vmem>>, vector<1x8x32xf32>,
    %c3_i32 = arith.constant 3 : i32
    %118 = arith.index_cast %c3_i32 : i32 to index
    %c0_37 = arith.constant 0 : index
    %c0_38 = arith.constant 0 : index
    %119 = vector.load %arg11[%118, %c0_37, %c0_38] : memref<8x8x96xf32, #tpu.memory_space<vmem>>, vector<1x8x96xf32>
    %120 = vector.shape_cast %119 : vector<1x8x96xf32> to vector<8x96xf32>
    %cst_39 = arith.constant dense<0.000000e+00> : vector<8x96xf32>
    %121 = tpu.matmul %113, %8, %cst_39 {dimension_numbers = #tpu.dot_dimension_numbers<[1], [0], [0], [1], [0, 0, 1, 1], [], []>} : vector<8x32xf32>, vector<32x96xf32>, vector<8x96xf32> -> vector<8x96xf32>
    %122 = arith.addf %121, %11 : vector<8x96xf32>
    %123 = vector.extract_strided_slice %120 {offsets = [0, 0], sizes = [8, 32], strides = [1, 1]} : vector<8x96xf32> to vector<8x32xf32>
    %124 = vector.extract_strided_slice %122 {offsets = [0, 0], sizes = [8, 32], strides = [1, 1]} : vector<8x96xf32> to vector<8x32xf32>
    %125 = arith.addf %123, %124 : vector<8x32xf32>
    %126 = arith.negf %125 : vector<8x32xf32>
    %127 = math.exp %126 : vector<8x32xf32>
    %cst_40 = arith.constant 1.000000e+00 : f32
    %128 = vector.broadcast %cst_40 : f32 to vector<8x32xf32>
    %129 = arith.addf %128, %127 : vector<8x32xf32>
    %130 = arith.divf %128, %129 : vector<8x32xf32>
    %131 = vector.extract_strided_slice %120 {offsets = [0, 32], sizes = [8, 32], strides = [1, 1]} : vector<8x96xf32> to vector<8x32xf32>
    %132 = vector.extract_strided_slice %122 {offsets = [0, 32], sizes = [8, 32], strides = [1, 1]} : vector<8x96xf32> to vector<8x32xf32>
    %133 = arith.addf %131, %132 : vector<8x32xf32>
    %134 = arith.negf %133 : vector<8x32xf32>
    %135 = math.exp %134 : vector<8x32xf32>
    %cst_41 = arith.constant 1.000000e+00 : f32
    %136 = vector.broadcast %cst_41 : f32 to vector<8x32xf32>
    %137 = arith.addf %136, %135 : vector<8x32xf32>
    %138 = arith.divf %136, %137 : vector<8x32xf32>
    %139 = vector.extract_strided_slice %120 {offsets = [0, 64], sizes = [8, 32], strides = [1, 1]} : vector<8x96xf32> to vector<8x32xf32>
    %140 = vector.extract_strided_slice %122 {offsets = [0, 64], sizes = [8, 32], strides = [1, 1]} : vector<8x96xf32> to vector<8x32xf32>
    %141 = arith.mulf %130, %140 : vector<8x32xf32>
    %142 = arith.addf %139, %141 : vector<8x32xf32>
    %143 = math.tanh %142 : vector<8x32xf32>
    %cst_42 = arith.constant 1.000000e+00 : f32
    %144 = vector.broadcast %cst_42 : f32 to vector<8x32xf32>
    %145 = arith.subf %144, %138 : vector<8x32xf32>
    %146 = arith.mulf %145, %143 : vector<8x32xf32>
    %147 = arith.mulf %138, %113 : vector<8x32xf32>
    %148 = arith.addf %146, %147 : vector<8x32xf32>
    %149 = arith.index_cast %c3_i32 : i32 to index
    %c0_43 = arith.constant 0 : index
    %c0_44 = arith.constant 0 : index
    %150 = vector.load %arg12[%149, %c0_43, %c0_44] : memref<8x8x32xf32, #tpu.memory_space<vmem>>, vector<1x8x32xf32>
    %151 = vector.shape_cast %150 : vector<1x8x32xf32> to vector<8x32xf32>
    %152 = vector.shape_cast %148 : vector<8x32xf32> to vector<1x8x32xf32>
    tpu.vector_store %arg12[%149, %c0_43, %c0_44], %152 {strides = array<i32>} : memref<8x8x32xf32, #tpu.memory_space<vmem>>, vector<1x8x32xf32>,
    %c4_i32 = arith.constant 4 : i32
    %153 = arith.index_cast %c4_i32 : i32 to index
    %c0_45 = arith.constant 0 : index
    %c0_46 = arith.constant 0 : index
    %154 = vector.load %arg11[%153, %c0_45, %c0_46] : memref<8x8x96xf32, #tpu.memory_space<vmem>>, vector<1x8x96xf32>
    %155 = vector.shape_cast %154 : vector<1x8x96xf32> to vector<8x96xf32>
    %cst_47 = arith.constant dense<0.000000e+00> : vector<8x96xf32>
    %156 = tpu.matmul %148, %8, %cst_47 {dimension_numbers = #tpu.dot_dimension_numbers<[1], [0], [0], [1], [0, 0, 1, 1], [], []>} : vector<8x32xf32>, vector<32x96xf32>, vector<8x96xf32> -> vector<8x96xf32>
    %157 = arith.addf %156, %11 : vector<8x96xf32>
    %158 = vector.extract_strided_slice %155 {offsets = [0, 0], sizes = [8, 32], strides = [1, 1]} : vector<8x96xf32> to vector<8x32xf32>
    %159 = vector.extract_strided_slice %157 {offsets = [0, 0], sizes = [8, 32], strides = [1, 1]} : vector<8x96xf32> to vector<8x32xf32>
    %160 = arith.addf %158, %159 : vector<8x32xf32>
    %161 = arith.negf %160 : vector<8x32xf32>
    %162 = math.exp %161 : vector<8x32xf32>
    %cst_48 = arith.constant 1.000000e+00 : f32
    %163 = vector.broadcast %cst_48 : f32 to vector<8x32xf32>
    %164 = arith.addf %163, %162 : vector<8x32xf32>
    %165 = arith.divf %163, %164 : vector<8x32xf32>
    %166 = vector.extract_strided_slice %155 {offsets = [0, 32], sizes = [8, 32], strides = [1, 1]} : vector<8x96xf32> to vector<8x32xf32>
    %167 = vector.extract_strided_slice %157 {offsets = [0, 32], sizes = [8, 32], strides = [1, 1]} : vector<8x96xf32> to vector<8x32xf32>
    %168 = arith.addf %166, %167 : vector<8x32xf32>
    %169 = arith.negf %168 : vector<8x32xf32>
    %170 = math.exp %169 : vector<8x32xf32>
    %cst_49 = arith.constant 1.000000e+00 : f32
    %171 = vector.broadcast %cst_49 : f32 to vector<8x32xf32>
    %172 = arith.addf %171, %170 : vector<8x32xf32>
    %173 = arith.divf %171, %172 : vector<8x32xf32>
    %174 = vector.extract_strided_slice %155 {offsets = [0, 64], sizes = [8, 32], strides = [1, 1]} : vector<8x96xf32> to vector<8x32xf32>
    %175 = vector.extract_strided_slice %157 {offsets = [0, 64], sizes = [8, 32], strides = [1, 1]} : vector<8x96xf32> to vector<8x32xf32>
    %176 = arith.mulf %165, %175 : vector<8x32xf32>
    %177 = arith.addf %174, %176 : vector<8x32xf32>
    %178 = math.tanh %177 : vector<8x32xf32>
    %cst_50 = arith.constant 1.000000e+00 : f32
    %179 = vector.broadcast %cst_50 : f32 to vector<8x32xf32>
    %180 = arith.subf %179, %173 : vector<8x32xf32>
    %181 = arith.mulf %180, %178 : vector<8x32xf32>
    %182 = arith.mulf %173, %148 : vector<8x32xf32>
    %183 = arith.addf %181, %182 : vector<8x32xf32>
    %184 = arith.index_cast %c4_i32 : i32 to index
    %c0_51 = arith.constant 0 : index
    %c0_52 = arith.constant 0 : index
    %185 = vector.load %arg12[%184, %c0_51, %c0_52] : memref<8x8x32xf32, #tpu.memory_space<vmem>>, vector<1x8x32xf32>
    %186 = vector.shape_cast %185 : vector<1x8x32xf32> to vector<8x32xf32>
    %187 = vector.shape_cast %183 : vector<8x32xf32> to vector<1x8x32xf32>
    tpu.vector_store %arg12[%184, %c0_51, %c0_52], %187 {strides = array<i32>} : memref<8x8x32xf32, #tpu.memory_space<vmem>>, vector<1x8x32xf32>,
    %c5_i32 = arith.constant 5 : i32
    %188 = arith.index_cast %c5_i32 : i32 to index
    %c0_53 = arith.constant 0 : index
    %c0_54 = arith.constant 0 : index
    %189 = vector.load %arg11[%188, %c0_53, %c0_54] : memref<8x8x96xf32, #tpu.memory_space<vmem>>, vector<1x8x96xf32>
    %190 = vector.shape_cast %189 : vector<1x8x96xf32> to vector<8x96xf32>
    %cst_55 = arith.constant dense<0.000000e+00> : vector<8x96xf32>
    %191 = tpu.matmul %183, %8, %cst_55 {dimension_numbers = #tpu.dot_dimension_numbers<[1], [0], [0], [1], [0, 0, 1, 1], [], []>} : vector<8x32xf32>, vector<32x96xf32>, vector<8x96xf32> -> vector<8x96xf32>
    %192 = arith.addf %191, %11 : vector<8x96xf32>
    %193 = vector.extract_strided_slice %190 {offsets = [0, 0], sizes = [8, 32], strides = [1, 1]} : vector<8x96xf32> to vector<8x32xf32>
    %194 = vector.extract_strided_slice %192 {offsets = [0, 0], sizes = [8, 32], strides = [1, 1]} : vector<8x96xf32> to vector<8x32xf32>
    %195 = arith.addf %193, %194 : vector<8x32xf32>
    %196 = arith.negf %195 : vector<8x32xf32>
    %197 = math.exp %196 : vector<8x32xf32>
    %cst_56 = arith.constant 1.000000e+00 : f32
    %198 = vector.broadcast %cst_56 : f32 to vector<8x32xf32>
    %199 = arith.addf %198, %197 : vector<8x32xf32>
    %200 = arith.divf %198, %199 : vector<8x32xf32>
    %201 = vector.extract_strided_slice %190 {offsets = [0, 32], sizes = [8, 32], strides = [1, 1]} : vector<8x96xf32> to vector<8x32xf32>
    %202 = vector.extract_strided_slice %192 {offsets = [0, 32], sizes = [8, 32], strides = [1, 1]} : vector<8x96xf32> to vector<8x32xf32>
    %203 = arith.addf %201, %202 : vector<8x32xf32>
    %204 = arith.negf %203 : vector<8x32xf32>
    %205 = math.exp %204 : vector<8x32xf32>
    %cst_57 = arith.constant 1.000000e+00 : f32
    %206 = vector.broadcast %cst_57 : f32 to vector<8x32xf32>
    %207 = arith.addf %206, %205 : vector<8x32xf32>
    %208 = arith.divf %206, %207 : vector<8x32xf32>
    %209 = vector.extract_strided_slice %190 {offsets = [0, 64], sizes = [8, 32], strides = [1, 1]} : vector<8x96xf32> to vector<8x32xf32>
    %210 = vector.extract_strided_slice %192 {offsets = [0, 64], sizes = [8, 32], strides = [1, 1]} : vector<8x96xf32> to vector<8x32xf32>
    %211 = arith.mulf %200, %210 : vector<8x32xf32>
    %212 = arith.addf %209, %211 : vector<8x32xf32>
    %213 = math.tanh %212 : vector<8x32xf32>
    %cst_58 = arith.constant 1.000000e+00 : f32
    %214 = vector.broadcast %cst_58 : f32 to vector<8x32xf32>
    %215 = arith.subf %214, %208 : vector<8x32xf32>
    %216 = arith.mulf %215, %213 : vector<8x32xf32>
    %217 = arith.mulf %208, %183 : vector<8x32xf32>
    %218 = arith.addf %216, %217 : vector<8x32xf32>
    %219 = arith.index_cast %c5_i32 : i32 to index
    %c0_59 = arith.constant 0 : index
    %c0_60 = arith.constant 0 : index
    %220 = vector.load %arg12[%219, %c0_59, %c0_60] : memref<8x8x32xf32, #tpu.memory_space<vmem>>, vector<1x8x32xf32>
    %221 = vector.shape_cast %220 : vector<1x8x32xf32> to vector<8x32xf32>
    %222 = vector.shape_cast %218 : vector<8x32xf32> to vector<1x8x32xf32>
    tpu.vector_store %arg12[%219, %c0_59, %c0_60], %222 {strides = array<i32>} : memref<8x8x32xf32, #tpu.memory_space<vmem>>, vector<1x8x32xf32>,
    %c6_i32 = arith.constant 6 : i32
    %223 = arith.index_cast %c6_i32 : i32 to index
    %c0_61 = arith.constant 0 : index
    %c0_62 = arith.constant 0 : index
    %224 = vector.load %arg11[%223, %c0_61, %c0_62] : memref<8x8x96xf32, #tpu.memory_space<vmem>>, vector<1x8x96xf32>
    %225 = vector.shape_cast %224 : vector<1x8x96xf32> to vector<8x96xf32>
    %cst_63 = arith.constant dense<0.000000e+00> : vector<8x96xf32>
    %226 = tpu.matmul %218, %8, %cst_63 {dimension_numbers = #tpu.dot_dimension_numbers<[1], [0], [0], [1], [0, 0, 1, 1], [], []>} : vector<8x32xf32>, vector<32x96xf32>, vector<8x96xf32> -> vector<8x96xf32>
    %227 = arith.addf %226, %11 : vector<8x96xf32>
    %228 = vector.extract_strided_slice %225 {offsets = [0, 0], sizes = [8, 32], strides = [1, 1]} : vector<8x96xf32> to vector<8x32xf32>
    %229 = vector.extract_strided_slice %227 {offsets = [0, 0], sizes = [8, 32], strides = [1, 1]} : vector<8x96xf32> to vector<8x32xf32>
    %230 = arith.addf %228, %229 : vector<8x32xf32>
    %231 = arith.negf %230 : vector<8x32xf32>
    %232 = math.exp %231 : vector<8x32xf32>
    %cst_64 = arith.constant 1.000000e+00 : f32
    %233 = vector.broadcast %cst_64 : f32 to vector<8x32xf32>
    %234 = arith.addf %233, %232 : vector<8x32xf32>
    %235 = arith.divf %233, %234 : vector<8x32xf32>
    %236 = vector.extract_strided_slice %225 {offsets = [0, 32], sizes = [8, 32], strides = [1, 1]} : vector<8x96xf32> to vector<8x32xf32>
    %237 = vector.extract_strided_slice %227 {offsets = [0, 32], sizes = [8, 32], strides = [1, 1]} : vector<8x96xf32> to vector<8x32xf32>
    %238 = arith.addf %236, %237 : vector<8x32xf32>
    %239 = arith.negf %238 : vector<8x32xf32>
    %240 = math.exp %239 : vector<8x32xf32>
    %cst_65 = arith.constant 1.000000e+00 : f32
    %241 = vector.broadcast %cst_65 : f32 to vector<8x32xf32>
    %242 = arith.addf %241, %240 : vector<8x32xf32>
    %243 = arith.divf %241, %242 : vector<8x32xf32>
    %244 = vector.extract_strided_slice %225 {offsets = [0, 64], sizes = [8, 32], strides = [1, 1]} : vector<8x96xf32> to vector<8x32xf32>
    %245 = vector.extract_strided_slice %227 {offsets = [0, 64], sizes = [8, 32], strides = [1, 1]} : vector<8x96xf32> to vector<8x32xf32>
    %246 = arith.mulf %235, %245 : vector<8x32xf32>
    %247 = arith.addf %244, %246 : vector<8x32xf32>
    %248 = math.tanh %247 : vector<8x32xf32>
    %cst_66 = arith.constant 1.000000e+00 : f32
    %249 = vector.broadcast %cst_66 : f32 to vector<8x32xf32>
    %250 = arith.subf %249, %243 : vector<8x32xf32>
    %251 = arith.mulf %250, %248 : vector<8x32xf32>
    %252 = arith.mulf %243, %218 : vector<8x32xf32>
    %253 = arith.addf %251, %252 : vector<8x32xf32>
    %254 = arith.index_cast %c6_i32 : i32 to index
    %c0_67 = arith.constant 0 : index
    %c0_68 = arith.constant 0 : index
    %255 = vector.load %arg12[%254, %c0_67, %c0_68] : memref<8x8x32xf32, #tpu.memory_space<vmem>>, vector<1x8x32xf32>
    %256 = vector.shape_cast %255 : vector<1x8x32xf32> to vector<8x32xf32>
    %257 = vector.shape_cast %253 : vector<8x32xf32> to vector<1x8x32xf32>
    tpu.vector_store %arg12[%254, %c0_67, %c0_68], %257 {strides = array<i32>} : memref<8x8x32xf32, #tpu.memory_space<vmem>>, vector<1x8x32xf32>,
    %c7_i32 = arith.constant 7 : i32
    %258 = arith.index_cast %c7_i32 : i32 to index
    %c0_69 = arith.constant 0 : index
    %c0_70 = arith.constant 0 : index
    %259 = vector.load %arg11[%258, %c0_69, %c0_70] : memref<8x8x96xf32, #tpu.memory_space<vmem>>, vector<1x8x96xf32>
    %260 = vector.shape_cast %259 : vector<1x8x96xf32> to vector<8x96xf32>
    %cst_71 = arith.constant dense<0.000000e+00> : vector<8x96xf32>
    %261 = tpu.matmul %253, %8, %cst_71 {dimension_numbers = #tpu.dot_dimension_numbers<[1], [0], [0], [1], [0, 0, 1, 1], [], []>} : vector<8x32xf32>, vector<32x96xf32>, vector<8x96xf32> -> vector<8x96xf32>
    %262 = arith.addf %261, %11 : vector<8x96xf32>
    %263 = vector.extract_strided_slice %260 {offsets = [0, 0], sizes = [8, 32], strides = [1, 1]} : vector<8x96xf32> to vector<8x32xf32>
    %264 = vector.extract_strided_slice %262 {offsets = [0, 0], sizes = [8, 32], strides = [1, 1]} : vector<8x96xf32> to vector<8x32xf32>
    %265 = arith.addf %263, %264 : vector<8x32xf32>
    %266 = arith.negf %265 : vector<8x32xf32>
    %267 = math.exp %266 : vector<8x32xf32>
    %cst_72 = arith.constant 1.000000e+00 : f32
    %268 = vector.broadcast %cst_72 : f32 to vector<8x32xf32>
    %269 = arith.addf %268, %267 : vector<8x32xf32>
    %270 = arith.divf %268, %269 : vector<8x32xf32>
    %271 = vector.extract_strided_slice %260 {offsets = [0, 32], sizes = [8, 32], strides = [1, 1]} : vector<8x96xf32> to vector<8x32xf32>
    %272 = vector.extract_strided_slice %262 {offsets = [0, 32], sizes = [8, 32], strides = [1, 1]} : vector<8x96xf32> to vector<8x32xf32>
    %273 = arith.addf %271, %272 : vector<8x32xf32>
    %274 = arith.negf %273 : vector<8x32xf32>
    %275 = math.exp %274 : vector<8x32xf32>
    %cst_73 = arith.constant 1.000000e+00 : f32
    %276 = vector.broadcast %cst_73 : f32 to vector<8x32xf32>
    %277 = arith.addf %276, %275 : vector<8x32xf32>
    %278 = arith.divf %276, %277 : vector<8x32xf32>
    %279 = vector.extract_strided_slice %260 {offsets = [0, 64], sizes = [8, 32], strides = [1, 1]} : vector<8x96xf32> to vector<8x32xf32>
    %280 = vector.extract_strided_slice %262 {offsets = [0, 64], sizes = [8, 32], strides = [1, 1]} : vector<8x96xf32> to vector<8x32xf32>
    %281 = arith.mulf %270, %280 : vector<8x32xf32>
    %282 = arith.addf %279, %281 : vector<8x32xf32>
    %283 = math.tanh %282 : vector<8x32xf32>
    %cst_74 = arith.constant 1.000000e+00 : f32
    %284 = vector.broadcast %cst_74 : f32 to vector<8x32xf32>
    %285 = arith.subf %284, %278 : vector<8x32xf32>
    %286 = arith.mulf %285, %283 : vector<8x32xf32>
    %287 = arith.mulf %278, %253 : vector<8x32xf32>
    %288 = arith.addf %286, %287 : vector<8x32xf32>
    %289 = arith.index_cast %c7_i32 : i32 to index
    %c0_75 = arith.constant 0 : index
    %c0_76 = arith.constant 0 : index
    %290 = vector.load %arg12[%289, %c0_75, %c0_76] : memref<8x8x32xf32, #tpu.memory_space<vmem>>, vector<1x8x32xf32>
    %291 = vector.shape_cast %290 : vector<1x8x32xf32> to vector<8x32xf32>
    %292 = vector.shape_cast %288 : vector<8x32xf32> to vector<1x8x32xf32>
    tpu.vector_store %arg12[%289, %c0_75, %c0_76], %292 {strides = array<i32>} : memref<8x8x32xf32, #tpu.memory_space<vmem>>, vector<1x8x32xf32>,
    %c8_i32 = arith.constant 8 : i32
    %c0_77 = arith.constant 0 : index
    %c0_78 = arith.constant 0 : index
    %c0_79 = arith.constant 0 : index
    %293 = vector.load %arg12[%c0_77, %c0_78, %c0_79] : memref<8x8x32xf32, #tpu.memory_space<vmem>>, vector<8x8x32xf32>
    %294 = vector.shape_cast %293 : vector<8x8x32xf32> to vector<64x32xf32>
    %c0_80 = arith.constant 0 : index
    %c0_81 = arith.constant 0 : index
    %295 = vector.load %arg6[%c0_80, %c0_81] : memref<32x32xf32, #tpu.memory_space<vmem>>, vector<32x32xf32>
    %cst_82 = arith.constant dense<0.000000e+00> : vector<64x32xf32>
    %296 = tpu.matmul %294, %295, %cst_82 {dimension_numbers = #tpu.dot_dimension_numbers<[1], [0], [0], [1], [0, 0, 1, 1], [], []>} : vector<64x32xf32>, vector<32x32xf32>, vector<64x32xf32> -> vector<64x32xf32>
    %c0_83 = arith.constant 0 : index
    %c0_84 = arith.constant 0 : index
    %297 = vector.load %arg7[%c0_83, %c0_84] : memref<1x32xf32, #tpu.memory_space<vmem>>, vector<1x32xf32>
    %298 = vector.broadcast %297 : vector<1x32xf32> to vector<64x32xf32>
    %299 = arith.addf %296, %298 : vector<64x32xf32>
    %cst_85 = arith.constant 0.000000e+00 : f32
    %300 = vector.broadcast %cst_85 : f32 to vector<64x32xf32>
    %301 = arith.maximumf %299, %300 : vector<64x32xf32>
    %c0_86 = arith.constant 0 : index
    %c0_87 = arith.constant 0 : index
    %302 = vector.load %arg8[%c0_86, %c0_87] : memref<32x32xf32, #tpu.memory_space<vmem>>, vector<32x32xf32>
    %cst_88 = arith.constant dense<0.000000e+00> : vector<64x32xf32>
    %303 = tpu.matmul %301, %302, %cst_88 {dimension_numbers = #tpu.dot_dimension_numbers<[1], [0], [0], [1], [0, 0, 1, 1], [], []>} : vector<64x32xf32>, vector<32x32xf32>, vector<64x32xf32> -> vector<64x32xf32>
    %c0_89 = arith.constant 0 : index
    %c0_90 = arith.constant 0 : index
    %304 = vector.load %arg9[%c0_89, %c0_90] : memref<1x32xf32, #tpu.memory_space<vmem>>, vector<1x32xf32>
    %305 = vector.broadcast %304 : vector<1x32xf32> to vector<64x32xf32>
    %306 = arith.addf %303, %305 : vector<64x32xf32>
    %307 = vector.extract_strided_slice %306 {offsets = [0, 0], sizes = [64, 16], strides = [1, 1]} : vector<64x32xf32> to vector<64x16xf32>
    %308 = arith.negf %307 : vector<64x16xf32>
    %309 = math.exp %308 : vector<64x16xf32>
    %cst_91 = arith.constant 1.000000e+00 : f32
    %310 = vector.broadcast %cst_91 : f32 to vector<64x16xf32>
    %311 = arith.addf %310, %309 : vector<64x16xf32>
    %312 = arith.divf %310, %311 : vector<64x16xf32>
    %313 = vector.extract_strided_slice %306 {offsets = [0, 16], sizes = [64, 16], strides = [1, 1]} : vector<64x32xf32> to vector<64x16xf32>
    %cst_92 = arith.constant 0.000000e+00 : f32
    %314 = vector.broadcast %cst_92 : f32 to vector<64x16xf32>
    %315 = arith.maximumf %313, %314 : vector<64x16xf32>
    %316 = vector.broadcast %cst_92 : f32 to vector<64x16xf32>
    %317 = arith.subf %313, %316 : vector<64x16xf32>
    %318 = arith.cmpf one, %317, %317 : vector<64x16xf32>
    %319 = vector.broadcast %cst_92 : f32 to vector<64x16xf32>
    %320 = arith.addf %313, %319 : vector<64x16xf32>
    %321 = math.absf %317 : vector<64x16xf32>
    %cst_93 = arith.constant 0.000000e+00 : f32
    %322 = vector.broadcast %cst_93 : f32 to vector<64x16xf32>
    %323 = arith.subf %322, %321 : vector<64x16xf32>
    %324 = math.exp %323 : vector<64x16xf32>
    %325 = math.log1p %324 : vector<64x16xf32>
    %326 = arith.addf %315, %325 : vector<64x16xf32>
    %327 = arith.select %318, %320, %326 : vector<64x16xi1>, vector<64x16xf32>
    %c0_94 = arith.constant 0 : index
    %c0_95 = arith.constant 0 : index
    %328 = vector.load %arg1[%c0_94, %c0_95] : memref<64x16xf32, #tpu.memory_space<vmem>>, vector<64x16xf32>
    %329 = arith.mulf %328, %327 : vector<64x16xf32>
    %330 = arith.addf %329, %312 : vector<64x16xf32>
    %331 = tpu.concatenate %330, %312, %327 in 1 : vector<64x16xf32>, vector<64x16xf32>, vector<64x16xf32> -> vector<64x48xf32>
    %c0_96 = arith.constant 0 : index
    %c0_97 = arith.constant 0 : index
    %332 = vector.load %arg10[%c0_96, %c0_97] : memref<64x48xf32, #tpu.memory_space<vmem>>, vector<64x48xf32>
    tpu.vector_store %arg10[%c0_96, %c0_97], %331 {strides = array<i32>} : memref<64x48xf32, #tpu.memory_space<vmem>>, vector<64x48xf32>,
    return
  }
}

</mosaic_0001>

<llo_original>
// kernel: tpu_custom_call.1
$region0: #{tpu_custom_call.1}
  #allocation0 [shape = 'u32[]', space=smem, size = 0x4, offset = 0x4, fixed_abs, tag = 'smem constant byte address 0x4 - core index']
  #allocation1 [shape = 'u32[144,128]{1,0:T(1,128)}', space=vmem, size = 0x12000, scoped, tag = 'internal scratch']
  #allocation2 [shape = 'f32[8,8,96]{2,1,0:T(8,128)}', space=vmem, size = 0x8000, scoped, tag = 'scratch operand']
  #allocation3 [shape = 'f32[8,8,32]{2,1,0:T(8,128)}', space=vmem, size = 0x8000, scoped, tag = 'scratch operand']
  %s0 = inlined_call_operand.vmem [shape: f32[64,16], index: 0, kind: input, shape index: {}]
  %s1 = inlined_call_operand.vmem [shape: f32[64,16], index: 1, kind: input, shape index: {}]
  %s2 = inlined_call_operand.vmem [shape: f32[16,96], index: 2, kind: input, shape index: {}]
  %s3 = inlined_call_operand.vmem [shape: f32[32,96], index: 3, kind: input, shape index: {}]
  %s4 = inlined_call_operand.vmem [shape: f32[1,96], index: 4, kind: input, shape index: {}]
  %s5 = inlined_call_operand.vmem [shape: f32[1,96], index: 5, kind: input, shape index: {}]
  %s6 = inlined_call_operand.vmem [shape: f32[32,32], index: 6, kind: input, shape index: {}]
  %s7 = inlined_call_operand.vmem [shape: f32[1,32], index: 7, kind: input, shape index: {}]
  %s8 = inlined_call_operand.vmem [shape: f32[32,32], index: 8, kind: input, shape index: {}]
  %s9 = inlined_call_operand.vmem [shape: f32[1,32], index: 9, kind: input, shape index: {}]
  %s10 = inlined_call_operand.vmem [shape: f32[64,48], index: 10, kind: output, shape index: {}]
  %s11 = sld [smem:[#allocation0]]
  $region50: #{tpu_custom_call.1} parent=0
    _
  %s13 = ssub.s32 1, %s11
  %s14 = scalar_select 0, %s13, %s11
  // Predicated region
  $region2: #{tpu_custom_call.1} parent=0 // pred_check
    _
  $region3: #{tpu_custom_call.1} parent=0 // pred_check_branch
    %16 = sbr.rel (0) target = $region5
  $region4: #{tpu_custom_call.1} parent=0 // pred_region
    _
  $region5: #{tpu_custom_call.1} parent=0 // pred_fallthru
    _
  // Predicated region
  $region6: #{tpu_custom_call.1} parent=0 // pred_check
    _
  $region7: #{tpu_custom_call.1} parent=0 // pred_check_branch
    %18 = sbr.rel (0) target = $region9
  $region8: #{tpu_custom_call.1} parent=0 // pred_region
    _
  $region9: #{tpu_custom_call.1} parent=0 // pred_fallthru
    _
  // Predicated region
  $region10: #{tpu_custom_call.1} parent=0 // pred_check
    _
  $region11: #{tpu_custom_call.1} parent=0 // pred_check_branch
    %20 = sbr.rel (0) target = $region13
  $region12: #{tpu_custom_call.1} parent=0 // pred_region
    _
  $region13: #{tpu_custom_call.1} parent=0 // pred_fallthru
    _
  // Predicated region
  $region14: #{tpu_custom_call.1} parent=0 // pred_check
    _
  $region15: #{tpu_custom_call.1} parent=0 // pred_check_branch
    %22 = sbr.rel (0) target = $region17
  $region16: #{tpu_custom_call.1} parent=0 // pred_region
    _
  $region17: #{tpu_custom_call.1} parent=0 // pred_fallthru
    _
  // Predicated region
  $region18: #{tpu_custom_call.1} parent=0 // pred_check
    _
  $region19: #{tpu_custom_call.1} parent=0 // pred_check_branch
    %24 = sbr.rel (0) target = $region21
  $region20: #{tpu_custom_call.1} parent=0 // pred_region
    _
  $region21: #{tpu_custom_call.1} parent=0 // pred_fallthru
    _
  // Predicated region
  $region22: #{tpu_custom_call.1} parent=0 // pred_check
    _
  $region23: #{tpu_custom_call.1} parent=0 // pred_check_branch
    %26 = sbr.rel (0) target = $region25
  $region24: #{tpu_custom_call.1} parent=0 // pred_region
    _
  $region25: #{tpu_custom_call.1} parent=0 // pred_fallthru
    _
  // Predicated region
  $region26: #{tpu_custom_call.1} parent=0 // pred_check
    _
  $region27: #{tpu_custom_call.1} parent=0 // pred_check_branch
    %28 = sbr.rel (0) target = $region29
  $region28: #{tpu_custom_call.1} parent=0 // pred_region
    _
  $region29: #{tpu_custom_call.1} parent=0 // pred_fallthru
    _
  // Predicated region
  $region30: #{tpu_custom_call.1} parent=0 // pred_check
    _
  $region31: #{tpu_custom_call.1} parent=0 // pred_check_branch
    %30 = sbr.rel (0) target = $region33
  $region32: #{tpu_custom_call.1} parent=0 // pred_region
    _
  $region33: #{tpu_custom_call.1} parent=0 // pred_fallthru
    _
  // Predicated region
  $region34: #{tpu_custom_call.1} parent=0 // pred_check
    _
  $region35: #{tpu_custom_call.1} parent=0 // pred_check_branch
    %32 = sbr.rel (0) target = $region37
  $region36: #{tpu_custom_call.1} parent=0 // pred_region
    _
  $region37: #{tpu_custom_call.1} parent=0 // pred_fallthru
    _
  // Predicated region
  $region38: #{tpu_custom_call.1} parent=0 // pred_check
    _
  $region39: #{tpu_custom_call.1} parent=0 // pred_check_branch
    %34 = sbr.rel (0) target = $region41
  $region40: #{tpu_custom_call.1} parent=0 // pred_region
    _
  $region41: #{tpu_custom_call.1} parent=0 // pred_fallthru
    _
  %v35 = vld [vmem:[%s0] sm:$0xff]
  %v36 = vld [vmem:[%s0 + $0x8] sm:$0xff]
  %v37 = vld [vmem:[%s0 + $0x10] sm:$0xff]
  %v38 = vld [vmem:[%s0 + $0x18] sm:$0xff]
  %v39 = vld [vmem:[%s0 + $0x20] sm:$0xff]
  %v40 = vld [vmem:[%s0 + $0x28] sm:$0xff]
  %v41 = vld [vmem:[%s0 + $0x30] sm:$0xff]
  %v42 = vld [vmem:[%s0 + $0x38] sm:$0xff]
  %v43 = vld [vmem:[%s2] sm:$0xff]
  %v44 = vld [vmem:[%s2 + $0x8] sm:$0xff]
  %v45 = vld [vmem:[%s4] sm:$0x1]
  %v47 = vlaneseq
  %v48 = vshrl.u32 %v47, 7
  %v49 = vsub.s32 0, %v48
  %v50 = vrot.slane %v45, %v49
  %vm52 = vcmask 130048
  %v54 = vsel %vm52, %v35, 0
  %v57 = vsel %vm52, %v36, 0
  %v60 = vsel %vm52, %v37, 0
  %v63 = vsel %vm52, %v38, 0
  %v66 = vsel %vm52, %v39, 0
  %v69 = vsel %vm52, %v40, 0
  %v72 = vsel %vm52, %v41, 0
  %v75 = vsel %vm52, %v42, 0
  %77 = vmatprep.subr.mxu0 0.0
  %78 = vmatpush1.msra.mxu0 %v43
  %79 = vmatprep.subr.mxu0 0.0
  %80 = vmatpush1.msra.mxu0 %v44
  %81 = vmatprep.subr.mxu0 0.0
  %82 = vmatpush1.msra.mxu0 0.0
  %83 = vmatprep.subr.mxu0 0.0
  %84 = vmatpush1.msra.mxu0 0.0
  %85 = vmatprep.subr.mxu0 0.0
  %86 = vmatpush1.msra.mxu0 0.0
  %87 = vmatprep.subr.mxu0 0.0
  %88 = vmatpush1.msra.mxu0 0.0
  %89 = vmatprep.subr.mxu0 0.0
  %90 = vmatpush1.msra.mxu0 0.0
  %91 = vmatprep.subr.mxu0 0.0
  %92 = vmatpush1.msra.mxu0 0.0
  %93 = vmatprep.subr.mxu0 0.0
  %94 = vmatpush1.msra.mxu0 0.0
  %95 = vmatprep.subr.mxu0 0.0
  %96 = vmatpush1.msra.mxu0 0.0
  %97 = vmatprep.subr.mxu0 0.0
  %98 = vmatpush1.msra.mxu0 0.0
  %99 = vmatprep.subr.mxu0 0.0
  %100 = vmatpush1.msra.mxu0 0.0
  %101 = vmatprep.subr.mxu0 0.0
  %102 = vmatpush1.msra.mxu0 0.0
  %103 = vmatprep.subr.mxu0 0.0
  %104 = vmatpush1.msra.mxu0 0.0
  %105 = vmatprep.subr.mxu0 0.0
  %106 = vmatpush1.msra.mxu0 0.0
  %107 = vmatprep.subr.mxu0 0.0
  %108 = vmatpush1.msra.mxu0 0.0
  %109 = vmatprep.subr.mxu0 0.0
  %110 = vmatpush1.msra.mxu0 0.0
  %111 = vmatprep.subr.mxu0 0.0
  %112 = vmatpush1.msra.mxu0 0.0
  %113 = vmatprep.subr.mxu0 0.0
  %114 = vmatpush1.msra.mxu0 0.0
  %115 = vmatprep.subr.mxu0 0.0
  %116 = vmatpush1.msra.mxu0 0.0
  %117 = vmatprep.subr.mxu0 0.0
  %118 = vmatpush1.msra.mxu0 0.0
  %119 = vmatprep.subr.mxu0 0.0
  %120 = vmatpush1.msra.mxu0 0.0
  %121 = vmatprep.subr.mxu0 0.0
  %122 = vmatpush1.msra.mxu0 0.0
  %123 = vmatprep.subr.mxu0 0.0
  %124 = vmatpush1.msra.mxu0 0.0
  %125 = vmatprep.subr.mxu0 0.0
  %126 = vmatpush1.msra.mxu0 0.0
  %127 = vmatprep.subr.mxu0 0.0
  %128 = vmatpush1.msra.mxu0 0.0
  %129 = vmatprep.subr.mxu0 0.0
  %130 = vmatpush1.msra.mxu0 0.0
  %131 = vmatprep.subr.mxu0 0.0
  %132 = vmatpush1.msra.mxu0 0.0
  %133 = vmatprep.subr.mxu0 0.0
  %134 = vmatpush1.msra.mxu0 0.0
  %135 = vmatprep.subr.mxu0 0.0
  %136 = vmatpush1.msra.mxu0 0.0
  %137 = vmatprep.subr.mxu0 0.0
  %138 = vmatpush1.msra.mxu0 0.0
  %139 = vmatprep.subr.mxu0 0.0
  %140 = vmatpush1.msra.mxu0 0.0
  %141 = vmatprep.mubr.f32.mxu0 0.0
  %142 = vmatmul.mubr.f32.gmra.mrb[0].mxu0 %v54
  %v143 = vpop.f32.mrb[0].mxu0
  %v144 = vadd.f32 %v50, %v143
  %v145 = vpop.f32.mrb[0].mxu0
  %146 = vmatprep.mubr.f32.mxu0 0.0
  %147 = vmatmul.mubr.f32.gmra.mrb[0].mxu0 %v57
  %v148 = vpop.f32.mrb[0].mxu0
  %v149 = vadd.f32 %v50, %v148
  %v150 = vpop.f32.mrb[0].mxu0
  %151 = vmatprep.mubr.f32.mxu0 0.0
  %152 = vmatmul.mubr.f32.gmra.mrb[0].mxu0 %v60
  %v153 = vpop.f32.mrb[0].mxu0
  %v154 = vadd.f32 %v50, %v153
  %v155 = vpop.f32.mrb[0].mxu0
  %156 = vmatprep.mubr.f32.mxu0 0.0
  %157 = vmatmul.mubr.f32.gmra.mrb[0].mxu0 %v63
  %v158 = vpop.f32.mrb[0].mxu0
  %v159 = vadd.f32 %v50, %v158
  %v160 = vpop.f32.mrb[0].mxu0
  %161 = vmatprep.mubr.f32.mxu0 0.0
  %162 = vmatmul.mubr.f32.gmra.mrb[0].mxu0 %v66
  %v163 = vpop.f32.mrb[0].mxu0
  %v164 = vadd.f32 %v50, %v163
  %v165 = vpop.f32.mrb[0].mxu0
  %166 = vmatprep.mubr.f32.mxu0 0.0
  %167 = vmatmul.mubr.f32.gmra.mrb[0].mxu0 %v69
  %v168 = vpop.f32.mrb[0].mxu0
  %v169 = vadd.f32 %v50, %v168
  %v170 = vpop.f32.mrb[0].mxu0
  %171 = vmatprep.mubr.f32.mxu0 0.0
  %172 = vmatmul.mubr.f32.gmra.mrb[0].mxu0 %v72
  %v173 = vpop.f32.mrb[0].mxu0
  %v174 = vadd.f32 %v50, %v173
  %v175 = vpop.f32.mrb[0].mxu0
  %176 = vmatprep.mubr.f32.mxu0 0.0
  %177 = vmatmul.mubr.f32.gmra.mrb[0].mxu0 %v75
  %v178 = vpop.f32.mrb[0].mxu0
  %v179 = vadd.f32 %v50, %v178
  %v180 = vpop.f32.mrb[0].mxu0
  %181 = vdwg.mxu0
  %vm182 = vcmask 785408
  %183 = vst.msk [vmem:[#allocation2] sm:$0xff] %vm182, %v144
  %184 = vst.msk [vmem:[#allocation2 + $0x8] sm:$0xff] %vm182, %v149
  %185 = vst.msk [vmem:[#allocation2 + $0x10] sm:$0xff] %vm182, %v154
  %186 = vst.msk [vmem:[#allocation2 + $0x18] sm:$0xff] %vm182, %v159
  %187 = vst.msk [vmem:[#allocation2 + $0x20] sm:$0xff] %vm182, %v164
  %188 = vst.msk [vmem:[#allocation2 + $0x28] sm:$0xff] %vm182, %v169
  %189 = vst.msk [vmem:[#allocation2 + $0x30] sm:$0xff] %vm182, %v174
  %190 = vst.msk [vmem:[#allocation2 + $0x38] sm:$0xff] %vm182, %v179
  %v191 = vld [vmem:[%s3] sm:$0xff]
  %v192 = vld [vmem:[%s3 + $0x8] sm:$0xff]
  %v193 = vld [vmem:[%s3 + $0x10] sm:$0xff]
  %v194 = vld [vmem:[%s3 + $0x18] sm:$0xff]
  %v195 = vld [vmem:[%s5] sm:$0x1]
  %v197 = vlaneseq
  %v198 = vshrl.u32 %v197, 7
  %v199 = vsub.s32 0, %v198
  %v200 = vrot.slane %v195, %v199
  %v202 = vld [vmem:[#allocation2] sm:$0xff]
  %vm203 = vcmask 261120
  %v205 = vsel %vm203, 0.0, 0
  %207 = vmatprep.subr.mxu0 0.0
  %208 = vmatpush1.msra.mxu0 %v191
  %209 = vmatprep.subr.mxu0 0.0
  %210 = vmatpush1.msra.mxu0 %v192
  %211 = vmatprep.subr.mxu0 0.0
  %212 = vmatpush1.msra.mxu0 %v193
  %213 = vmatprep.subr.mxu0 0.0
  %214 = vmatpush1.msra.mxu0 %v194
  %215 = vmatprep.subr.mxu0 0.0
  %216 = vmatpush1.msra.mxu0 0.0
  %217 = vmatprep.subr.mxu0 0.0
  %218 = vmatpush1.msra.mxu0 0.0
  %219 = vmatprep.subr.mxu0 0.0
  %220 = vmatpush1.msra.mxu0 0.0
  %221 = vmatprep.subr.mxu0 0.0
  %222 = vmatpush1.msra.mxu0 0.0
  %223 = vmatprep.subr.mxu0 0.0
  %224 = vmatpush1.msra.mxu0 0.0
  %225 = vmatprep.subr.mxu0 0.0
  %226 = vmatpush1.msra.mxu0 0.0
  %227 = vmatprep.subr.mxu0 0.0
  %228 = vmatpush1.msra.mxu0 0.0
  %229 = vmatprep.subr.mxu0 0.0
  %230 = vmatpush1.msra.mxu0 0.0
  %231 = vmatprep.subr.mxu0 0.0
  %232 = vmatpush1.msra.mxu0 0.0
  %233 = vmatprep.subr.mxu0 0.0
  %234 = vmatpush1.msra.mxu0 0.0
  %235 = vmatprep.subr.mxu0 0.0
  %236 = vmatpush1.msra.mxu0 0.0
  %237 = vmatprep.subr.mxu0 0.0
  %238 = vmatpush1.msra.mxu0 0.0
  %239 = vmatprep.subr.mxu0 0.0
  %240 = vmatpush1.msra.mxu0 0.0
  %241 = vmatprep.subr.mxu0 0.0
  %242 = vmatpush1.msra.mxu0 0.0
  %243 = vmatprep.subr.mxu0 0.0
  %244 = vmatpush1.msra.mxu0 0.0
  %245 = vmatprep.subr.mxu0 0.0
  %246 = vmatpush1.msra.mxu0 0.0
  %247 = vmatprep.subr.mxu0 0.0
  %248 = vmatpush1.msra.mxu0 0.0
  %249 = vmatprep.subr.mxu0 0.0
  %250 = vmatpush1.msra.mxu0 0.0
  %251 = vmatprep.subr.mxu0 0.0
  %252 = vmatpush1.msra.mxu0 0.0
  %253 = vmatprep.subr.mxu0 0.0
  %254 = vmatpush1.msra.mxu0 0.0
  %255 = vmatprep.subr.mxu0 0.0
  %256 = vmatpush1.msra.mxu0 0.0
  %257 = vmatprep.subr.mxu0 0.0
  %258 = vmatpush1.msra.mxu0 0.0
  %259 = vmatprep.subr.mxu0 0.0
  %260 = vmatpush1.msra.mxu0 0.0
  %261 = vmatprep.subr.mxu0 0.0
  %262 = vmatpush1.msra.mxu0 0.0
  %263 = vmatprep.subr.mxu0 0.0
  %264 = vmatpush1.msra.mxu0 0.0
  %265 = vmatprep.subr.mxu0 0.0
  %266 = vmatpush1.msra.mxu0 0.0
  %267 = vmatprep.subr.mxu0 0.0
  %268 = vmatpush1.msra.mxu0 0.0
  %269 = vmatprep.subr.mxu0 0.0
  %270 = vmatpush1.msra.mxu0 0.0
  %271 = vmatprep.mubr.f32.mxu0 0.0
  %272 = vmatmul.mubr.f32.gmra.mrb[0].mxu0 %v205
  %v273 = vpop.f32.mrb[0].mxu0
  %v274 = vadd.f32 %v200, %v273
  %v275 = vpop.f32.mrb[0].mxu0
  %276 = vdwg.mxu0
  %v277 = vadd.f32 %v202, %v274
  %v278 = vxor.u32 %v277, 2147483648
  %v279 = vmul.f32 %v278, 1.442695
  %v280 = vpow.pop %v279
  %v281 = vadd.f32 %v280, 1.0
  %v282 = vrcp.pop %v281
  %v283 = vmul.f32 1.0, %v282
  %285 = vrot.lane.b32.xlu0 %v274, 64
  %v286 = vpop.permute.xlu0 %285
  %v288 = vmul.f32 %v283, %v286
  %290 = vrot.lane.b32.xlu0 %v288, 64
  %v291 = vpop.permute.xlu0 %290
  %v293 = vadd.f32 %v202, %v291
  %v294 = vtanh.pop %v293
  %v295 = vsub.f32 1.0, %v283
  %297 = vrot.lane.b32.xlu0 %v294, 96
  %v298 = vpop.permute.xlu0 %297
  %v300 = vmul.f32 %v295, %v298
  %v301 = vmul.f32 %v283, 0.0
  %v302 = vadd.f32 %v300, %v301
  %304 = vrot.lane.b32.xlu0 %v302, 96
  %v305 = vpop.permute.xlu0 %304
  %307 = vst.msk [vmem:[#allocation3] sm:$0xff] %vm203, %v305
  %s308 = scalar_lea.vmem [#allocation2], 8
  %v309 = vld [vmem:[%s308] sm:$0xff]
  %v310 = vsel %vm203, %v305, 0
  %312 = vmatprep.subr.mxu0 0.0
  %313 = vmatpush1.msra.mxu0 %v191
  %314 = vmatprep.subr.mxu0 0.0
  %315 = vmatpush1.msra.mxu0 %v192
  %316 = vmatprep.subr.mxu0 0.0
  %317 = vmatpush1.msra.mxu0 %v193
  %318 = vmatprep.subr.mxu0 0.0
  %319 = vmatpush1.msra.mxu0 %v194
  %320 = vmatprep.subr.mxu0 0.0
  %321 = vmatpush1.msra.mxu0 0.0
  %322 = vmatprep.subr.mxu0 0.0
  %323 = vmatpush1.msra.mxu0 0.0
  %324 = vmatprep.subr.mxu0 0.0
  %325 = vmatpush1.msra.mxu0 0.0
  %326 = vmatprep.subr.mxu0 0.0
  %327 = vmatpush1.msra.mxu0 0.0
  %328 = vmatprep.subr.mxu0 0.0
  %329 = vmatpush1.msra.mxu0 0.0
  %330 = vmatprep.subr.mxu0 0.0
  %331 = vmatpush1.msra.mxu0 0.0
  %332 = vmatprep.subr.mxu0 0.0
  %333 = vmatpush1.msra.mxu0 0.0
  %334 = vmatprep.subr.mxu0 0.0
  %335 = vmatpush1.msra.mxu0 0.0
  %336 = vmatprep.subr.mxu0 0.0
  %337 = vmatpush1.msra.mxu0 0.0
  %338 = vmatprep.subr.mxu0 0.0
  %339 = vmatpush1.msra.mxu0 0.0
  %340 = vmatprep.subr.mxu0 0.0
  %341 = vmatpush1.msra.mxu0 0.0
  %342 = vmatprep.subr.mxu0 0.0
  %343 = vmatpush1.msra.mxu0 0.0
  %344 = vmatprep.subr.mxu0 0.0
  %345 = vmatpush1.msra.mxu0 0.0
  %346 = vmatprep.subr.mxu0 0.0
  %347 = vmatpush1.msra.mxu0 0.0
  %348 = vmatprep.subr.mxu0 0.0
  %349 = vmatpush1.msra.mxu0 0.0
  %350 = vmatprep.subr.mxu0 0.0
  %351 = vmatpush1.msra.mxu0 0.0
  %352 = vmatprep.subr.mxu0 0.0
  %353 = vmatpush1.msra.mxu0 0.0
  %354 = vmatprep.subr.mxu0 0.0
  %355 = vmatpush1.msra.mxu0 0.0
  %356 = vmatprep.subr.mxu0 0.0
  %357 = vmatpush1.msra.mxu0 0.0
  %358 = vmatprep.subr.mxu0 0.0
  %359 = vmatpush1.msra.mxu0 0.0
  %360 = vmatprep.subr.mxu0 0.0
  %361 = vmatpush1.msra.mxu0 0.0
  %362 = vmatprep.subr.mxu0 0.0
  %363 = vmatpush1.msra.mxu0 0.0
  %364 = vmatprep.subr.mxu0 0.0
  %365 = vmatpush1.msra.mxu0 0.0
  %366 = vmatprep.subr.mxu0 0.0
  %367 = vmatpush1.msra.mxu0 0.0
  %368 = vmatprep.subr.mxu0 0.0
  %369 = vmatpush1.msra.mxu0 0.0
  %370 = vmatprep.subr.mxu0 0.0
  %371 = vmatpush1.msra.mxu0 0.0
  %372 = vmatprep.subr.mxu0 0.0
  %373 = vmatpush1.msra.mxu0 0.0
  %374 = vmatprep.subr.mxu0 0.0
  %375 = vmatpush1.msra.mxu0 0.0
  %376 = vmatprep.mubr.f32.mxu0 0.0
  %377 = vmatmul.mubr.f32.gmra.mrb[0].mxu0 %v310
  %v378 = vpop.f32.mrb[0].mxu0
  %v379 = vadd.f32 %v200, %v378
  %v380 = vpop.f32.mrb[0].mxu0
  %381 = vdwg.mxu0
  %v382 = vadd.f32 %v309, %v379
  %v383 = vxor.u32 %v382, 2147483648
  %v384 = vmul.f32 %v383, 1.442695
  %v385 = vpow.pop %v384
  %v386 = vadd.f32 %v385, 1.0
  %v387 = vrcp.pop %v386
  %v388 = vmul.f32 1.0, %v387
  %390 = vrot.lane.b32.xlu0 %v379, 64
  %v391 = vpop.permute.xlu0 %390
  %v393 = vmul.f32 %v388, %v391
  %395 = vrot.lane.b32.xlu0 %v393, 64
  %v396 = vpop.permute.xlu0 %395
  %v398 = vadd.f32 %v309, %v396
  %v399 = vtanh.pop %v398
  %v400 = vsub.f32 1.0, %v388
  %402 = vrot.lane.b32.xlu0 %v399, 96
  %v403 = vpop.permute.xlu0 %402
  %v405 = vmul.f32 %v400, %v403
  %v406 = vmul.f32 %v388, %v302
  %v407 = vadd.f32 %v405, %v406
  %409 = vrot.lane.b32.xlu0 %v407, 96
  %v410 = vpop.permute.xlu0 %409
  %s412 = scalar_lea.vmem [#allocation3], 8
  %413 = vst.msk [vmem:[%s412] sm:$0xff] %vm203, %v410
  %s414 = scalar_lea.vmem [#allocation2], 16
  %v415 = vld [vmem:[%s414] sm:$0xff]
  %v416 = vsel %vm203, %v410, 0
  %418 = vmatprep.subr.mxu0 0.0
  %419 = vmatpush1.msra.mxu0 %v191
  %420 = vmatprep.subr.mxu0 0.0
  %421 = vmatpush1.msra.mxu0 %v192
  %422 = vmatprep.subr.mxu0 0.0
  %423 = vmatpush1.msra.mxu0 %v193
  %424 = vmatprep.subr.mxu0 0.0
  %425 = vmatpush1.msra.mxu0 %v194
  %426 = vmatprep.subr.mxu0 0.0
  %427 = vmatpush1.msra.mxu0 0.0
  %428 = vmatprep.subr.mxu0 0.0
  %429 = vmatpush1.msra.mxu0 0.0
  %430 = vmatprep.subr.mxu0 0.0
  %431 = vmatpush1.msra.mxu0 0.0
  %432 = vmatprep.subr.mxu0 0.0
  %433 = vmatpush1.msra.mxu0 0.0
  %434 = vmatprep.subr.mxu0 0.0
  %435 = vmatpush1.msra.mxu0 0.0
  %436 = vmatprep.subr.mxu0 0.0
  %437 = vmatpush1.msra.mxu0 0.0
  %438 = vmatprep.subr.mxu0 0.0
  %439 = vmatpush1.msra.mxu0 0.0
  %440 = vmatprep.subr.mxu0 0.0
  %441 = vmatpush1.msra.mxu0 0.0
  %442 = vmatprep.subr.mxu0 0.0
  %443 = vmatpush1.msra.mxu0 0.0
  %444 = vmatprep.subr.mxu0 0.0
  %445 = vmatpush1.msra.mxu0 0.0
  %446 = vmatprep.subr.mxu0 0.0
  %447 = vmatpush1.msra.mxu0 0.0
  %448 = vmatprep.subr.mxu0 0.0
  %449 = vmatpush1.msra.mxu0 0.0
  %450 = vmatprep.subr.mxu0 0.0
  %451 = vmatpush1.msra.mxu0 0.0
  %452 = vmatprep.subr.mxu0 0.0
  %453 = vmatpush1.msra.mxu0 0.0
  %454 = vmatprep.subr.mxu0 0.0
  %455 = vmatpush1.msra.mxu0 0.0
  %456 = vmatprep.subr.mxu0 0.0
  %457 = vmatpush1.msra.mxu0 0.0
  %458 = vmatprep.subr.mxu0 0.0
  %459 = vmatpush1.msra.mxu0 0.0
  %460 = vmatprep.subr.mxu0 0.0
  %461 = vmatpush1.msra.mxu0 0.0
  %462 = vmatprep.subr.mxu0 0.0
  %463 = vmatpush1.msra.mxu0 0.0
  %464 = vmatprep.subr.mxu0 0.0
  %465 = vmatpush1.msra.mxu0 0.0
  %466 = vmatprep.subr.mxu0 0.0
  %467 = vmatpush1.msra.mxu0 0.0
  %468 = vmatprep.subr.mxu0 0.0
  %469 = vmatpush1.msra.mxu0 0.0
  %470 = vmatprep.subr.mxu0 0.0
  %471 = vmatpush1.msra.mxu0 0.0
  %472 = vmatprep.subr.mxu0 0.0
  %473 = vmatpush1.msra.mxu0 0.0
  %474 = vmatprep.subr.mxu0 0.0
  %475 = vmatpush1.msra.mxu0 0.0
  %476 = vmatprep.subr.mxu0 0.0
  %477 = vmatpush1.msra.mxu0 0.0
  %478 = vmatprep.subr.mxu0 0.0
  %479 = vmatpush1.msra.mxu0 0.0
  %480 = vmatprep.subr.mxu0 0.0
  %481 = vmatpush1.msra.mxu0 0.0
  %482 = vmatprep.mubr.f32.mxu0 0.0
  %483 = vmatmul.mubr.f32.gmra.mrb[0].mxu0 %v416
  %v484 = vpop.f32.mrb[0].mxu0
  %v485 = vadd.f32 %v200, %v484
  %v486 = vpop.f32.mrb[0].mxu0
  %487 = vdwg.mxu0
  %v488 = vadd.f32 %v415, %v485
  %v489 = vxor.u32 %v488, 2147483648
  %v490 = vmul.f32 %v489, 1.442695
  %v491 = vpow.pop %v490
  %v492 = vadd.f32 %v491, 1.0
  %v493 = vrcp.pop %v492
  %v494 = vmul.f32 1.0, %v493
  %496 = vrot.lane.b32.xlu0 %v485, 64
  %v497 = vpop.permute.xlu0 %496
  %v499 = vmul.f32 %v494, %v497
  %501 = vrot.lane.b32.xlu0 %v499, 64
  %v502 = vpop.permute.xlu0 %501
  %v504 = vadd.f32 %v415, %v502
  %v505 = vtanh.pop %v504
  %v506 = vsub.f32 1.0, %v494
  %508 = vrot.lane.b32.xlu0 %v505, 96
  %v509 = vpop.permute.xlu0 %508
  %v511 = vmul.f32 %v506, %v509
  %v512 = vmul.f32 %v494, %v407
  %v513 = vadd.f32 %v511, %v512
  %515 = vrot.lane.b32.xlu0 %v513, 96
  %v516 = vpop.permute.xlu0 %515
  %s518 = scalar_lea.vmem [#allocation3], 16
  %519 = vst.msk [vmem:[%s518] sm:$0xff] %vm203, %v516
  %s520 = scalar_lea.vmem [#allocation2], 24
  %v521 = vld [vmem:[%s520] sm:$0xff]
  %v522 = vsel %vm203, %v516, 0
  %524 = vmatprep.subr.mxu0 0.0
  %525 = vmatpush1.msra.mxu0 %v191
  %526 = vmatprep.subr.mxu0 0.0
  %527 = vmatpush1.msra.mxu0 %v192
  %528 = vmatprep.subr.mxu0 0.0
  %529 = vmatpush1.msra.mxu0 %v193
  %530 = vmatprep.subr.mxu0 0.0
  %531 = vmatpush1.msra.mxu0 %v194
  %532 = vmatprep.subr.mxu0 0.0
  %533 = vmatpush1.msra.mxu0 0.0
  %534 = vmatprep.subr.mxu0 0.0
  %535 = vmatpush1.msra.mxu0 0.0
  %536 = vmatprep.subr.mxu0 0.0
  %537 = vmatpush1.msra.mxu0 0.0
  %538 = vmatprep.subr.mxu0 0.0
  %539 = vmatpush1.msra.mxu0 0.0
  %540 = vmatprep.subr.mxu0 0.0
  %541 = vmatpush1.msra.mxu0 0.0
  %542 = vmatprep.subr.mxu0 0.0
  %543 = vmatpush1.msra.mxu0 0.0
  %544 = vmatprep.subr.mxu0 0.0
  %545 = vmatpush1.msra.mxu0 0.0
  %546 = vmatprep.subr.mxu0 0.0
  %547 = vmatpush1.msra.mxu0 0.0
  %548 = vmatprep.subr.mxu0 0.0
  %549 = vmatpush1.msra.mxu0 0.0
  %550 = vmatprep.subr.mxu0 0.0
  %551 = vmatpush1.msra.mxu0 0.0
  %552 = vmatprep.subr.mxu0 0.0
  %553 = vmatpush1.msra.mxu0 0.0
  %554 = vmatprep.subr.mxu0 0.0
  %555 = vmatpush1.msra.mxu0 0.0
  %556 = vmatprep.subr.mxu0 0.0
  %557 = vmatpush1.msra.mxu0 0.0
  %558 = vmatprep.subr.mxu0 0.0
  %559 = vmatpush1.msra.mxu0 0.0
  %560 = vmatprep.subr.mxu0 0.0
  %561 = vmatpush1.msra.mxu0 0.0
  %562 = vmatprep.subr.mxu0 0.0
  %563 = vmatpush1.msra.mxu0 0.0
  %564 = vmatprep.subr.mxu0 0.0
  %565 = vmatpush1.msra.mxu0 0.0
  %566 = vmatprep.subr.mxu0 0.0
  %567 = vmatpush1.msra.mxu0 0.0
  %568 = vmatprep.subr.mxu0 0.0
  %569 = vmatpush1.msra.mxu0 0.0
  %570 = vmatprep.subr.mxu0 0.0
  %571 = vmatpush1.msra.mxu0 0.0
  %572 = vmatprep.subr.mxu0 0.0
  %573 = vmatpush1.msra.mxu0 0.0
  %574 = vmatprep.subr.mxu0 0.0
  %575 = vmatpush1.msra.mxu0 0.0
  %576 = vmatprep.subr.mxu0 0.0
  %577 = vmatpush1.msra.mxu0 0.0
  %578 = vmatprep.subr.mxu0 0.0
  %579 = vmatpush1.msra.mxu0 0.0
  %580 = vmatprep.subr.mxu0 0.0
  %581 = vmatpush1.msra.mxu0 0.0
  %582 = vmatprep.subr.mxu0 0.0
  %583 = vmatpush1.msra.mxu0 0.0
  %584 = vmatprep.subr.mxu0 0.0
  %585 = vmatpush1.msra.mxu0 0.0
  %586 = vmatprep.subr.mxu0 0.0
  %587 = vmatpush1.msra.mxu0 0.0
  %588 = vmatprep.mubr.f32.mxu0 0.0
  %589 = vmatmul.mubr.f32.gmra.mrb[0].mxu0 %v522
  %v590 = vpop.f32.mrb[0].mxu0
  %v591 = vadd.f32 %v200, %v590
  %v592 = vpop.f32.mrb[0].mxu0
  %593 = vdwg.mxu0
  %v594 = vadd.f32 %v521, %v591
  %v595 = vxor.u32 %v594, 2147483648
  %v596 = vmul.f32 %v595, 1.442695
  %v597 = vpow.pop %v596
  %v598 = vadd.f32 %v597, 1.0
  %v599 = vrcp.pop %v598
  %v600 = vmul.f32 1.0, %v599
  %602 = vrot.lane.b32.xlu0 %v591, 64
  %v603 = vpop.permute.xlu0 %602
  %v605 = vmul.f32 %v600, %v603
  %607 = vrot.lane.b32.xlu0 %v605, 64
  %v608 = vpop.permute.xlu0 %607
  %v610 = vadd.f32 %v521, %v608
  %v611 = vtanh.pop %v610
  %v612 = vsub.f32 1.0, %v600
  %614 = vrot.lane.b32.xlu0 %v611, 96
  %v615 = vpop.permute.xlu0 %614
  %v617 = vmul.f32 %v612, %v615
  %v618 = vmul.f32 %v600, %v513
  %v619 = vadd.f32 %v617, %v618
  %621 = vrot.lane.b32.xlu0 %v619, 96
  %v622 = vpop.permute.xlu0 %621
  %s624 = scalar_lea.vmem [#allocation3], 24
  %625 = vst.msk [vmem:[%s624] sm:$0xff] %vm203, %v622
  %s626 = scalar_lea.vmem [#allocation2], 32
  %v627 = vld [vmem:[%s626] sm:$0xff]
  %v628 = vsel %vm203, %v622, 0
  %630 = vmatprep.subr.mxu0 0.0
  %631 = vmatpush1.msra.mxu0 %v191
  %632 = vmatprep.subr.mxu0 0.0
  %633 = vmatpush1.msra.mxu0 %v192
  %634 = vmatprep.subr.mxu0 0.0
  %635 = vmatpush1.msra.mxu0 %v193
  %636 = vmatprep.subr.mxu0 0.0
  %637 = vmatpush1.msra.mxu0 %v194
  %638 = vmatprep.subr.mxu0 0.0
  %639 = vmatpush1.msra.mxu0 0.0
  %640 = vmatprep.subr.mxu0 0.0
  %641 = vmatpush1.msra.mxu0 0.0
  %642 = vmatprep.subr.mxu0 0.0
  %643 = vmatpush1.msra.mxu0 0.0
  %644 = vmatprep.subr.mxu0 0.0
  %645 = vmatpush1.msra.mxu0 0.0
  %646 = vmatprep.subr.mxu0 0.0
  %647 = vmatpush1.msra.mxu0 0.0
  %648 = vmatprep.subr.mxu0 0.0
  %649 = vmatpush1.msra.mxu0 0.0
  %650 = vmatprep.subr.mxu0 0.0
  %651 = vmatpush1.msra.mxu0 0.0
  %652 = vmatprep.subr.mxu0 0.0
  %653 = vmatpush1.msra.mxu0 0.0
  %654 = vmatprep.subr.mxu0 0.0
  %655 = vmatpush1.msra.mxu0 0.0
  %656 = vmatprep.subr.mxu0 0.0
  %657 = vmatpush1.msra.mxu0 0.0
  %658 = vmatprep.subr.mxu0 0.0
  %659 = vmatpush1.msra.mxu0 0.0
  %660 = vmatprep.subr.mxu0 0.0
  %661 = vmatpush1.msra.mxu0 0.0
  %662 = vmatprep.subr.mxu0 0.0
  %663 = vmatpush1.msra.mxu0 0.0
  %664 = vmatprep.subr.mxu0 0.0
  %665 = vmatpush1.msra.mxu0 0.0
  %666 = vmatprep.subr.mxu0 0.0
  %667 = vmatpush1.msra.mxu0 0.0
  %668 = vmatprep.subr.mxu0 0.0
  %669 = vmatpush1.msra.mxu0 0.0
  %670 = vmatprep.subr.mxu0 0.0
  %671 = vmatpush1.msra.mxu0 0.0
  %672 = vmatprep.subr.mxu0 0.0
  %673 = vmatpush1.msra.mxu0 0.0
  %674 = vmatprep.subr.mxu0 0.0
  %675 = vmatpush1.msra.mxu0 0.0
  %676 = vmatprep.subr.mxu0 0.0
  %677 = vmatpush1.msra.mxu0 0.0
  %678 = vmatprep.subr.mxu0 0.0
  %679 = vmatpush1.msra.mxu0 0.0
  %680 = vmatprep.subr.mxu0 0.0
  %681 = vmatpush1.msra.mxu0 0.0
  %682 = vmatprep.subr.mxu0 0.0
  %683 = vmatpush1.msra.mxu0 0.0
  %684 = vmatprep.subr.mxu0 0.0
  %685 = vmatpush1.msra.mxu0 0.0
  %686 = vmatprep.subr.mxu0 0.0
  %687 = vmatpush1.msra.mxu0 0.0
  %688 = vmatprep.subr.mxu0 0.0
  %689 = vmatpush1.msra.mxu0 0.0
  %690 = vmatprep.subr.mxu0 0.0
  %691 = vmatpush1.msra.mxu0 0.0
  %692 = vmatprep.subr.mxu0 0.0
  %693 = vmatpush1.msra.mxu0 0.0
  %694 = vmatprep.mubr.f32.mxu0 0.0
  %695 = vmatmul.mubr.f32.gmra.mrb[0].mxu0 %v628
  %v696 = vpop.f32.mrb[0].mxu0
  %v697 = vadd.f32 %v200, %v696
  %v698 = vpop.f32.mrb[0].mxu0
  %699 = vdwg.mxu0
  %v700 = vadd.f32 %v627, %v697
  %v701 = vxor.u32 %v700, 2147483648
  %v702 = vmul.f32 %v701, 1.442695
  %v703 = vpow.pop %v702
  %v704 = vadd.f32 %v703, 1.0
  %v705 = vrcp.pop %v704
  %v706 = vmul.f32 1.0, %v705
  %708 = vrot.lane.b32.xlu0 %v697, 64
  %v709 = vpop.permute.xlu0 %708
  %v711 = vmul.f32 %v706, %v709
  %713 = vrot.lane.b32.xlu0 %v711, 64
  %v714 = vpop.permute.xlu0 %713
  %v716 = vadd.f32 %v627, %v714
  %v717 = vtanh.pop %v716
  %v718 = vsub.f32 1.0, %v706
  %720 = vrot.lane.b32.xlu0 %v717, 96
  %v721 = vpop.permute.xlu0 %720
  %v723 = vmul.f32 %v718, %v721
  %v724 = vmul.f32 %v706, %v619
  %v725 = vadd.f32 %v723, %v724
  %727 = vrot.lane.b32.xlu0 %v725, 96
  %v728 = vpop.permute.xlu0 %727
  %s730 = scalar_lea.vmem [#allocation3], 32
  %731 = vst.msk [vmem:[%s730] sm:$0xff] %vm203, %v728
  %s732 = scalar_lea.vmem [#allocation2], 40
  %v733 = vld [vmem:[%s732] sm:$0xff]
  %v734 = vsel %vm203, %v728, 0
  %736 = vmatprep.subr.mxu0 0.0
  %737 = vmatpush1.msra.mxu0 %v191
  %738 = vmatprep.subr.mxu0 0.0
  %739 = vmatpush1.msra.mxu0 %v192
  %740 = vmatprep.subr.mxu0 0.0
  %741 = vmatpush1.msra.mxu0 %v193
  %742 = vmatprep.subr.mxu0 0.0
  %743 = vmatpush1.msra.mxu0 %v194
  %744 = vmatprep.subr.mxu0 0.0
  %745 = vmatpush1.msra.mxu0 0.0
  %746 = vmatprep.subr.mxu0 0.0
  %747 = vmatpush1.msra.mxu0 0.0
  %748 = vmatprep.subr.mxu0 0.0
  %749 = vmatpush1.msra.mxu0 0.0
  %750 = vmatprep.subr.mxu0 0.0
  %751 = vmatpush1.msra.mxu0 0.0
  %752 = vmatprep.subr.mxu0 0.0
  %753 = vmatpush1.msra.mxu0 0.0
  %754 = vmatprep.subr.mxu0 0.0
  %755 = vmatpush1.msra.mxu0 0.0
  %756 = vmatprep.subr.mxu0 0.0
  %757 = vmatpush1.msra.mxu0 0.0
  %758 = vmatprep.subr.mxu0 0.0
  %759 = vmatpush1.msra.mxu0 0.0
  %760 = vmatprep.subr.mxu0 0.0
  %761 = vmatpush1.msra.mxu0 0.0
  %762 = vmatprep.subr.mxu0 0.0
  %763 = vmatpush1.msra.mxu0 0.0
  %764 = vmatprep.subr.mxu0 0.0
  %765 = vmatpush1.msra.mxu0 0.0
  %766 = vmatprep.subr.mxu0 0.0
  %767 = vmatpush1.msra.mxu0 0.0
  %768 = vmatprep.subr.mxu0 0.0
  %769 = vmatpush1.msra.mxu0 0.0
  %770 = vmatprep.subr.mxu0 0.0
  %771 = vmatpush1.msra.mxu0 0.0
  %772 = vmatprep.subr.mxu0 0.0
  %773 = vmatpush1.msra.mxu0 0.0
  %774 = vmatprep.subr.mxu0 0.0
  %775 = vmatpush1.msra.mxu0 0.0
  %776 = vmatprep.subr.mxu0 0.0
  %777 = vmatpush1.msra.mxu0 0.0
  %778 = vmatprep.subr.mxu0 0.0
  %779 = vmatpush1.msra.mxu0 0.0
  %780 = vmatprep.subr.mxu0 0.0
  %781 = vmatpush1.msra.mxu0 0.0
  %782 = vmatprep.subr.mxu0 0.0
  %783 = vmatpush1.msra.mxu0 0.0
  %784 = vmatprep.subr.mxu0 0.0
  %785 = vmatpush1.msra.mxu0 0.0
  %786 = vmatprep.subr.mxu0 0.0
  %787 = vmatpush1.msra.mxu0 0.0
  %788 = vmatprep.subr.mxu0 0.0
  %789 = vmatpush1.msra.mxu0 0.0
  %790 = vmatprep.subr.mxu0 0.0
  %791 = vmatpush1.msra.mxu0 0.0
  %792 = vmatprep.subr.mxu0 0.0
  %793 = vmatpush1.msra.mxu0 0.0
  %794 = vmatprep.subr.mxu0 0.0
  %795 = vmatpush1.msra.mxu0 0.0
  %796 = vmatprep.subr.mxu0 0.0
  %797 = vmatpush1.msra.mxu0 0.0
  %798 = vmatprep.subr.mxu0 0.0
  %799 = vmatpush1.msra.mxu0 0.0
  %800 = vmatprep.mubr.f32.mxu0 0.0
  %801 = vmatmul.mubr.f32.gmra.mrb[0].mxu0 %v734
  %v802 = vpop.f32.mrb[0].mxu0
  %v803 = vadd.f32 %v200, %v802
  %v804 = vpop.f32.mrb[0].mxu0
  %805 = vdwg.mxu0
  %v806 = vadd.f32 %v733, %v803
  %v807 = vxor.u32 %v806, 2147483648
  %v808 = vmul.f32 %v807, 1.442695
  %v809 = vpow.pop %v808
  %v810 = vadd.f32 %v809, 1.0
  %v811 = vrcp.pop %v810
  %v812 = vmul.f32 1.0, %v811
  %814 = vrot.lane.b32.xlu0 %v803, 64
  %v815 = vpop.permute.xlu0 %814
  %v817 = vmul.f32 %v812, %v815
  %819 = vrot.lane.b32.xlu0 %v817, 64
  %v820 = vpop.permute.xlu0 %819
  %v822 = vadd.f32 %v733, %v820
  %v823 = vtanh.pop %v822
  %v824 = vsub.f32 1.0, %v812
  %826 = vrot.lane.b32.xlu0 %v823, 96
  %v827 = vpop.permute.xlu0 %826
  %v829 = vmul.f32 %v824, %v827
  %v830 = vmul.f32 %v812, %v725
  %v831 = vadd.f32 %v829, %v830
  %833 = vrot.lane.b32.xlu0 %v831, 96
  %v834 = vpop.permute.xlu0 %833
  %s836 = scalar_lea.vmem [#allocation3], 40
  %837 = vst.msk [vmem:[%s836] sm:$0xff] %vm203, %v834
  %s838 = scalar_lea.vmem [#allocation2], 48
  %v839 = vld [vmem:[%s838] sm:$0xff]
  %v840 = vsel %vm203, %v834, 0
  %842 = vmatprep.subr.mxu0 0.0
  %843 = vmatpush1.msra.mxu0 %v191
  %844 = vmatprep.subr.mxu0 0.0
  %845 = vmatpush1.msra.mxu0 %v192
  %846 = vmatprep.subr.mxu0 0.0
  %847 = vmatpush1.msra.mxu0 %v193
  %848 = vmatprep.subr.mxu0 0.0
  %849 = vmatpush1.msra.mxu0 %v194
  %850 = vmatprep.subr.mxu0 0.0
  %851 = vmatpush1.msra.mxu0 0.0
  %852 = vmatprep.subr.mxu0 0.0
  %853 = vmatpush1.msra.mxu0 0.0
  %854 = vmatprep.subr.mxu0 0.0
  %855 = vmatpush1.msra.mxu0 0.0
  %856 = vmatprep.subr.mxu0 0.0
  %857 = vmatpush1.msra.mxu0 0.0
  %858 = vmatprep.subr.mxu0 0.0
  %859 = vmatpush1.msra.mxu0 0.0
  %860 = vmatprep.subr.mxu0 0.0
  %861 = vmatpush1.msra.mxu0 0.0
  %862 = vmatprep.subr.mxu0 0.0
  %863 = vmatpush1.msra.mxu0 0.0
  %864 = vmatprep.subr.mxu0 0.0
  %865 = vmatpush1.msra.mxu0 0.0
  %866 = vmatprep.subr.mxu0 0.0
  %867 = vmatpush1.msra.mxu0 0.0
  %868 = vmatprep.subr.mxu0 0.0
  %869 = vmatpush1.msra.mxu0 0.0
  %870 = vmatprep.subr.mxu0 0.0
  %871 = vmatpush1.msra.mxu0 0.0
  %872 = vmatprep.subr.mxu0 0.0
  %873 = vmatpush1.msra.mxu0 0.0
  %874 = vmatprep.subr.mxu0 0.0
  %875 = vmatpush1.msra.mxu0 0.0
  %876 = vmatprep.subr.mxu0 0.0
  %877 = vmatpush1.msra.mxu0 0.0
  %878 = vmatprep.subr.mxu0 0.0
  %879 = vmatpush1.msra.mxu0 0.0
  %880 = vmatprep.subr.mxu0 0.0
  %881 = vmatpush1.msra.mxu0 0.0
  %882 = vmatprep.subr.mxu0 0.0
  %883 = vmatpush1.msra.mxu0 0.0
  %884 = vmatprep.subr.mxu0 0.0
  %885 = vmatpush1.msra.mxu0 0.0
  %886 = vmatprep.subr.mxu0 0.0
  %887 = vmatpush1.msra.mxu0 0.0
  %888 = vmatprep.subr.mxu0 0.0
  %889 = vmatpush1.msra.mxu0 0.0
  %890 = vmatprep.subr.mxu0 0.0
  %891 = vmatpush1.msra.mxu0 0.0
  %892 = vmatprep.subr.mxu0 0.0
  %893 = vmatpush1.msra.mxu0 0.0
  %894 = vmatprep.subr.mxu0 0.0
  %895 = vmatpush1.msra.mxu0 0.0
  %896 = vmatprep.subr.mxu0 0.0
  %897 = vmatpush1.msra.mxu0 0.0
  %898 = vmatprep.subr.mxu0 0.0
  %899 = vmatpush1.msra.mxu0 0.0
  %900 = vmatprep.subr.mxu0 0.0
  %901 = vmatpush1.msra.mxu0 0.0
  %902 = vmatprep.subr.mxu0 0.0
  %903 = vmatpush1.msra.mxu0 0.0
  %904 = vmatprep.subr.mxu0 0.0
  %905 = vmatpush1.msra.mxu0 0.0
  %906 = vmatprep.mubr.f32.mxu0 0.0
  %907 = vmatmul.mubr.f32.gmra.mrb[0].mxu0 %v840
  %v908 = vpop.f32.mrb[0].mxu0
  %v909 = vadd.f32 %v200, %v908
  %v910 = vpop.f32.mrb[0].mxu0
  %911 = vdwg.mxu0
  %v912 = vadd.f32 %v839, %v909
  %v913 = vxor.u32 %v912, 2147483648
  %v914 = vmul.f32 %v913, 1.442695
  %v915 = vpow.pop %v914
  %v916 = vadd.f32 %v915, 1.0
  %v917 = vrcp.pop %v916
  %v918 = vmul.f32 1.0, %v917
  %920 = vrot.lane.b32.xlu0 %v909, 64
  %v921 = vpop.permute.xlu0 %920
  %v923 = vmul.f32 %v918, %v921
  %925 = vrot.lane.b32.xlu0 %v923, 64
  %v926 = vpop.permute.xlu0 %925
  %v928 = vadd.f32 %v839, %v926
  %v929 = vtanh.pop %v928
  %v930 = vsub.f32 1.0, %v918
  %932 = vrot.lane.b32.xlu0 %v929, 96
  %v933 = vpop.permute.xlu0 %932
  %v935 = vmul.f32 %v930, %v933
  %v936 = vmul.f32 %v918, %v831
  %v937 = vadd.f32 %v935, %v936
  %939 = vrot.lane.b32.xlu0 %v937, 96
  %v940 = vpop.permute.xlu0 %939
  %s942 = scalar_lea.vmem [#allocation3], 48
  %943 = vst.msk [vmem:[%s942] sm:$0xff] %vm203, %v940
  %s944 = scalar_lea.vmem [#allocation2], 56
  %v945 = vld [vmem:[%s944] sm:$0xff]
  %v946 = vsel %vm203, %v940, 0
  %948 = vmatprep.subr.mxu0 0.0
  %949 = vmatpush1.msra.mxu0 %v191
  %950 = vmatprep.subr.mxu0 0.0
  %951 = vmatpush1.msra.mxu0 %v192
  %952 = vmatprep.subr.mxu0 0.0
  %953 = vmatpush1.msra.mxu0 %v193
  %954 = vmatprep.subr.mxu0 0.0
  %955 = vmatpush1.msra.mxu0 %v194
  %956 = vmatprep.subr.mxu0 0.0
  %957 = vmatpush1.msra.mxu0 0.0
  %958 = vmatprep.subr.mxu0 0.0
  %959 = vmatpush1.msra.mxu0 0.0
  %960 = vmatprep.subr.mxu0 0.0
  %961 = vmatpush1.msra.mxu0 0.0
  %962 = vmatprep.subr.mxu0 0.0
  %963 = vmatpush1.msra.mxu0 0.0
  %964 = vmatprep.subr.mxu0 0.0
  %965 = vmatpush1.msra.mxu0 0.0
  %966 = vmatprep.subr.mxu0 0.0
  %967 = vmatpush1.msra.mxu0 0.0
  %968 = vmatprep.subr.mxu0 0.0
  %969 = vmatpush1.msra.mxu0 0.0
  %970 = vmatprep.subr.mxu0 0.0
  %971 = vmatpush1.msra.mxu0 0.0
  %972 = vmatprep.subr.mxu0 0.0
  %973 = vmatpush1.msra.mxu0 0.0
  %974 = vmatprep.subr.mxu0 0.0
  %975 = vmatpush1.msra.mxu0 0.0
  %976 = vmatprep.subr.mxu0 0.0
  %977 = vmatpush1.msra.mxu0 0.0
  %978 = vmatprep.subr.mxu0 0.0
  %979 = vmatpush1.msra.mxu0 0.0
  %980 = vmatprep.subr.mxu0 0.0
  %981 = vmatpush1.msra.mxu0 0.0
  %982 = vmatprep.subr.mxu0 0.0
  %983 = vmatpush1.msra.mxu0 0.0
  %984 = vmatprep.subr.mxu0 0.0
  %985 = vmatpush1.msra.mxu0 0.0
  %986 = vmatprep.subr.mxu0 0.0
  %987 = vmatpush1.msra.mxu0 0.0
  %988 = vmatprep.subr.mxu0 0.0
  %989 = vmatpush1.msra.mxu0 0.0
  %990 = vmatprep.subr.mxu0 0.0
  %991 = vmatpush1.msra.mxu0 0.0
  %992 = vmatprep.subr.mxu0 0.0
  %993 = vmatpush1.msra.mxu0 0.0
  %994 = vmatprep.subr.mxu0 0.0
  %995 = vmatpush1.msra.mxu0 0.0
  %996 = vmatprep.subr.mxu0 0.0
  %997 = vmatpush1.msra.mxu0 0.0
  %998 = vmatprep.subr.mxu0 0.0
  %999 = vmatpush1.msra.mxu0 0.0
  %1000 = vmatprep.subr.mxu0 0.0
  %1001 = vmatpush1.msra.mxu0 0.0
  %1002 = vmatprep.subr.mxu0 0.0
  %1003 = vmatpush1.msra.mxu0 0.0
  %1004 = vmatprep.subr.mxu0 0.0
  %1005 = vmatpush1.msra.mxu0 0.0
  %1006 = vmatprep.subr.mxu0 0.0
  %1007 = vmatpush1.msra.mxu0 0.0
  %1008 = vmatprep.subr.mxu0 0.0
  %1009 = vmatpush1.msra.mxu0 0.0
  %1010 = vmatprep.subr.mxu0 0.0
  %1011 = vmatpush1.msra.mxu0 0.0
  %1012 = vmatprep.mubr.f32.mxu0 0.0
  %1013 = vmatmul.mubr.f32.gmra.mrb[0].mxu0 %v946
  %v1014 = vpop.f32.mrb[0].mxu0
  %v1015 = vadd.f32 %v200, %v1014
  %v1016 = vpop.f32.mrb[0].mxu0
  %1017 = vdwg.mxu0
  %v1018 = vadd.f32 %v945, %v1015
  %v1019 = vxor.u32 %v1018, 2147483648
  %v1020 = vmul.f32 %v1019, 1.442695
  %v1021 = vpow.pop %v1020
  %v1022 = vadd.f32 %v1021, 1.0
  %v1023 = vrcp.pop %v1022
  %v1024 = vmul.f32 1.0, %v1023
  %1026 = vrot.lane.b32.xlu0 %v1015, 64
  %v1027 = vpop.permute.xlu0 %1026
  %v1029 = vmul.f32 %v1024, %v1027
  %1031 = vrot.lane.b32.xlu0 %v1029, 64
  %v1032 = vpop.permute.xlu0 %1031
  %v1034 = vadd.f32 %v945, %v1032
  %v1035 = vtanh.pop %v1034
  %v1036 = vsub.f32 1.0, %v1024
  %1038 = vrot.lane.b32.xlu0 %v1035, 96
  %v1039 = vpop.permute.xlu0 %1038
  %v1041 = vmul.f32 %v1036, %v1039
  %v1042 = vmul.f32 %v1024, %v937
  %v1043 = vadd.f32 %v1041, %v1042
  %1045 = vrot.lane.b32.xlu0 %v1043, 96
  %v1046 = vpop.permute.xlu0 %1045
  %s1048 = scalar_lea.vmem [#allocation3], 56
  %1049 = vst.msk [vmem:[%s1048] sm:$0xff] %vm203, %v1046
  %v1050 = vld [vmem:[#allocation3] sm:$0xff]
  %v1051 = vld [vmem:[#allocation3 + $0x8] sm:$0xff]
  %v1052 = vld [vmem:[#allocation3 + $0x10] sm:$0xff]
  %v1053 = vld [vmem:[#allocation3 + $0x18] sm:$0xff]
  %v1054 = vld [vmem:[#allocation3 + $0x20] sm:$0xff]
  %v1055 = vld [vmem:[#allocation3 + $0x28] sm:$0xff]
  %v1056 = vld [vmem:[#allocation3 + $0x30] sm:$0xff]
  %v1057 = vld [vmem:[#allocation3 + $0x38] sm:$0xff]
  %v1058 = vld [vmem:[%s6] sm:$0xff]
  %v1059 = vld [vmem:[%s6 + $0x8] sm:$0xff]
  %v1060 = vld [vmem:[%s6 + $0x10] sm:$0xff]
  %v1061 = vld [vmem:[%s6 + $0x18] sm:$0xff]
  %v1062 = vld [vmem:[%s7] sm:$0x1]
  %v1064 = vlaneseq
  %v1065 = vshrl.u32 %v1064, 7
  %v1066 = vsub.s32 0, %v1065
  %v1067 = vrot.slane %v1062, %v1066
  %v1070 = vsel %vm203, %v1050, 0
  %v1073 = vsel %vm203, %v1051, 0
  %v1076 = vsel %vm203, %v1052, 0
  %v1079 = vsel %vm203, %v1053, 0
  %v1082 = vsel %vm203, %v1054, 0
  %v1085 = vsel %vm203, %v1055, 0
  %v1088 = vsel %vm203, %v1056, 0
  %v1091 = vsel %vm203, %v1057, 0
  %1093 = vmatprep.subr.mxu0 0.0
  %1094 = vmatpush1.msra.mxu0 %v1058
  %1095 = vmatprep.subr.mxu0 0.0
  %1096 = vmatpush1.msra.mxu0 %v1059
  %1097 = vmatprep.subr.mxu0 0.0
  %1098 = vmatpush1.msra.mxu0 %v1060
  %1099 = vmatprep.subr.mxu0 0.0
  %1100 = vmatpush1.msra.mxu0 %v1061
  %1101 = vmatprep.subr.mxu0 0.0
  %1102 = vmatpush1.msra.mxu0 0.0
  %1103 = vmatprep.subr.mxu0 0.0
  %1104 = vmatpush1.msra.mxu0 0.0
  %1105 = vmatprep.subr.mxu0 0.0
  %1106 = vmatpush1.msra.mxu0 0.0
  %1107 = vmatprep.subr.mxu0 0.0
  %1108 = vmatpush1.msra.mxu0 0.0
  %1109 = vmatprep.subr.mxu0 0.0
  %1110 = vmatpush1.msra.mxu0 0.0
  %1111 = vmatprep.subr.mxu0 0.0
  %1112 = vmatpush1.msra.mxu0 0.0
  %1113 = vmatprep.subr.mxu0 0.0
  %1114 = vmatpush1.msra.mxu0 0.0
  %1115 = vmatprep.subr.mxu0 0.0
  %1116 = vmatpush1.msra.mxu0 0.0
  %1117 = vmatprep.subr.mxu0 0.0
  %1118 = vmatpush1.msra.mxu0 0.0
  %1119 = vmatprep.subr.mxu0 0.0
  %1120 = vmatpush1.msra.mxu0 0.0
  %1121 = vmatprep.subr.mxu0 0.0
  %1122 = vmatpush1.msra.mxu0 0.0
  %1123 = vmatprep.subr.mxu0 0.0
  %1124 = vmatpush1.msra.mxu0 0.0
  %1125 = vmatprep.subr.mxu0 0.0
  %1126 = vmatpush1.msra.mxu0 0.0
  %1127 = vmatprep.subr.mxu0 0.0
  %1128 = vmatpush1.msra.mxu0 0.0
  %1129 = vmatprep.subr.mxu0 0.0
  %1130 = vmatpush1.msra.mxu0 0.0
  %1131 = vmatprep.subr.mxu0 0.0
  %1132 = vmatpush1.msra.mxu0 0.0
  %1133 = vmatprep.subr.mxu0 0.0
  %1134 = vmatpush1.msra.mxu0 0.0
  %1135 = vmatprep.subr.mxu0 0.0
  %1136 = vmatpush1.msra.mxu0 0.0
  %1137 = vmatprep.subr.mxu0 0.0
  %1138 = vmatpush1.msra.mxu0 0.0
  %1139 = vmatprep.subr.mxu0 0.0
  %1140 = vmatpush1.msra.mxu0 0.0
  %1141 = vmatprep.subr.mxu0 0.0
  %1142 = vmatpush1.msra.mxu0 0.0
  %1143 = vmatprep.subr.mxu0 0.0
  %1144 = vmatpush1.msra.mxu0 0.0
  %1145 = vmatprep.subr.mxu0 0.0
  %1146 = vmatpush1.msra.mxu0 0.0
  %1147 = vmatprep.subr.mxu0 0.0
  %1148 = vmatpush1.msra.mxu0 0.0
  %1149 = vmatprep.subr.mxu0 0.0
  %1150 = vmatpush1.msra.mxu0 0.0
  %1151 = vmatprep.subr.mxu0 0.0
  %1152 = vmatpush1.msra.mxu0 0.0
  %1153 = vmatprep.subr.mxu0 0.0
  %1154 = vmatpush1.msra.mxu0 0.0
  %1155 = vmatprep.subr.mxu0 0.0
  %1156 = vmatpush1.msra.mxu0 0.0
  %1157 = vmatprep.mubr.f32.mxu0 0.0
  %1158 = vmatmul.mubr.f32.gmra.mrb[0].mxu0 %v1070
  %v1159 = vpop.f32.mrb[0].mxu0
  %v1160 = vadd.f32 %v1067, %v1159
  %v1161 = vpop.f32.mrb[0].mxu0
  %1162 = vmatprep.mubr.f32.mxu0 0.0
  %1163 = vmatmul.mubr.f32.gmra.mrb[0].mxu0 %v1073
  %v1164 = vpop.f32.mrb[0].mxu0
  %v1165 = vadd.f32 %v1067, %v1164
  %v1166 = vpop.f32.mrb[0].mxu0
  %1167 = vmatprep.mubr.f32.mxu0 0.0
  %1168 = vmatmul.mubr.f32.gmra.mrb[0].mxu0 %v1076
  %v1169 = vpop.f32.mrb[0].mxu0
  %v1170 = vadd.f32 %v1067, %v1169
  %v1171 = vpop.f32.mrb[0].mxu0
  %1172 = vmatprep.mubr.f32.mxu0 0.0
  %1173 = vmatmul.mubr.f32.gmra.mrb[0].mxu0 %v1079
  %v1174 = vpop.f32.mrb[0].mxu0
  %v1175 = vadd.f32 %v1067, %v1174
  %v1176 = vpop.f32.mrb[0].mxu0
  %1177 = vmatprep.mubr.f32.mxu0 0.0
  %1178 = vmatmul.mubr.f32.gmra.mrb[0].mxu0 %v1082
  %v1179 = vpop.f32.mrb[0].mxu0
  %v1180 = vadd.f32 %v1067, %v1179
  %v1181 = vpop.f32.mrb[0].mxu0
  %1182 = vmatprep.mubr.f32.mxu0 0.0
  %1183 = vmatmul.mubr.f32.gmra.mrb[0].mxu0 %v1085
  %v1184 = vpop.f32.mrb[0].mxu0
  %v1185 = vadd.f32 %v1067, %v1184
  %v1186 = vpop.f32.mrb[0].mxu0
  %1187 = vmatprep.mubr.f32.mxu0 0.0
  %1188 = vmatmul.mubr.f32.gmra.mrb[0].mxu0 %v1088
  %v1189 = vpop.f32.mrb[0].mxu0
  %v1190 = vadd.f32 %v1067, %v1189
  %v1191 = vpop.f32.mrb[0].mxu0
  %1192 = vmatprep.mubr.f32.mxu0 0.0
  %1193 = vmatmul.mubr.f32.gmra.mrb[0].mxu0 %v1091
  %v1194 = vpop.f32.mrb[0].mxu0
  %v1195 = vadd.f32 %v1067, %v1194
  %v1196 = vpop.f32.mrb[0].mxu0
  %1197 = vdwg.mxu0
  %v1198 = vmax.f32 %v1160, 0.0
  %v1199 = vmax.f32 %v1165, 0.0
  %v1200 = vmax.f32 %v1170, 0.0
  %v1201 = vmax.f32 %v1175, 0.0
  %v1202 = vmax.f32 %v1180, 0.0
  %v1203 = vmax.f32 %v1185, 0.0
  %v1204 = vmax.f32 %v1190, 0.0
  %v1205 = vmax.f32 %v1195, 0.0
  %v1206 = vld [vmem:[%s8] sm:$0xff]
  %v1207 = vld [vmem:[%s8 + $0x8] sm:$0xff]
  %v1208 = vld [vmem:[%s8 + $0x10] sm:$0xff]
  %v1209 = vld [vmem:[%s8 + $0x18] sm:$0xff]
  %v1210 = vld [vmem:[%s9] sm:$0x1]
  %v1212 = vlaneseq
  %v1213 = vshrl.u32 %v1212, 7
  %v1214 = vsub.s32 0, %v1213
  %v1215 = vrot.slane %v1210, %v1214
  %v1218 = vsel %vm203, %v1198, 0
  %v1221 = vsel %vm203, %v1199, 0
  %v1224 = vsel %vm203, %v1200, 0
  %v1227 = vsel %vm203, %v1201, 0
  %v1230 = vsel %vm203, %v1202, 0
  %v1233 = vsel %vm203, %v1203, 0
  %v1236 = vsel %vm203, %v1204, 0
  %v1239 = vsel %vm203, %v1205, 0
  %1241 = vmatprep.subr.mxu0 0.0
  %1242 = vmatpush1.msra.mxu0 %v1206
  %1243 = vmatprep.subr.mxu0 0.0
  %1244 = vmatpush1.msra.mxu0 %v1207
  %1245 = vmatprep.subr.mxu0 0.0
  %1246 = vmatpush1.msra.mxu0 %v1208
  %1247 = vmatprep.subr.mxu0 0.0
  %1248 = vmatpush1.msra.mxu0 %v1209
  %1249 = vmatprep.subr.mxu0 0.0
  %1250 = vmatpush1.msra.mxu0 0.0
  %1251 = vmatprep.subr.mxu0 0.0
  %1252 = vmatpush1.msra.mxu0 0.0
  %1253 = vmatprep.subr.mxu0 0.0
  %1254 = vmatpush1.msra.mxu0 0.0
  %1255 = vmatprep.subr.mxu0 0.0
  %1256 = vmatpush1.msra.mxu0 0.0
  %1257 = vmatprep.subr.mxu0 0.0
  %1258 = vmatpush1.msra.mxu0 0.0
  %1259 = vmatprep.subr.mxu0 0.0
  %1260 = vmatpush1.msra.mxu0 0.0
  %1261 = vmatprep.subr.mxu0 0.0
  %1262 = vmatpush1.msra.mxu0 0.0
  %1263 = vmatprep.subr.mxu0 0.0
  %1264 = vmatpush1.msra.mxu0 0.0
  %1265 = vmatprep.subr.mxu0 0.0
  %1266 = vmatpush1.msra.mxu0 0.0
  %1267 = vmatprep.subr.mxu0 0.0
  %1268 = vmatpush1.msra.mxu0 0.0
  %1269 = vmatprep.subr.mxu0 0.0
  %1270 = vmatpush1.msra.mxu0 0.0
  %1271 = vmatprep.subr.mxu0 0.0
  %1272 = vmatpush1.msra.mxu0 0.0
  %1273 = vmatprep.subr.mxu0 0.0
  %1274 = vmatpush1.msra.mxu0 0.0
  %1275 = vmatprep.subr.mxu0 0.0
  %1276 = vmatpush1.msra.mxu0 0.0
  %1277 = vmatprep.subr.mxu0 0.0
  %1278 = vmatpush1.msra.mxu0 0.0
  %1279 = vmatprep.subr.mxu0 0.0
  %1280 = vmatpush1.msra.mxu0 0.0
  %1281 = vmatprep.subr.mxu0 0.0
  %1282 = vmatpush1.msra.mxu0 0.0
  %1283 = vmatprep.subr.mxu0 0.0
  %1284 = vmatpush1.msra.mxu0 0.0
  %1285 = vmatprep.subr.mxu0 0.0
  %1286 = vmatpush1.msra.mxu0 0.0
  %1287 = vmatprep.subr.mxu0 0.0
  %1288 = vmatpush1.msra.mxu0 0.0
  %1289 = vmatprep.subr.mxu0 0.0
  %1290 = vmatpush1.msra.mxu0 0.0
  %1291 = vmatprep.subr.mxu0 0.0
  %1292 = vmatpush1.msra.mxu0 0.0
  %1293 = vmatprep.subr.mxu0 0.0
  %1294 = vmatpush1.msra.mxu0 0.0
  %1295 = vmatprep.subr.mxu0 0.0
  %1296 = vmatpush1.msra.mxu0 0.0
  %1297 = vmatprep.subr.mxu0 0.0
  %1298 = vmatpush1.msra.mxu0 0.0
  %1299 = vmatprep.subr.mxu0 0.0
  %1300 = vmatpush1.msra.mxu0 0.0
  %1301 = vmatprep.subr.mxu0 0.0
  %1302 = vmatpush1.msra.mxu0 0.0
  %1303 = vmatprep.subr.mxu0 0.0
  %1304 = vmatpush1.msra.mxu0 0.0
  %1305 = vmatprep.mubr.f32.mxu0 0.0
  %1306 = vmatmul.mubr.f32.gmra.mrb[0].mxu0 %v1218
  %v1307 = vpop.f32.mrb[0].mxu0
  %v1308 = vadd.f32 %v1215, %v1307
  %v1309 = vpop.f32.mrb[0].mxu0
  %1310 = vmatprep.mubr.f32.mxu0 0.0
  %1311 = vmatmul.mubr.f32.gmra.mrb[0].mxu0 %v1221
  %v1312 = vpop.f32.mrb[0].mxu0
  %v1313 = vadd.f32 %v1215, %v1312
  %v1314 = vpop.f32.mrb[0].mxu0
  %1315 = vmatprep.mubr.f32.mxu0 0.0
  %1316 = vmatmul.mubr.f32.gmra.mrb[0].mxu0 %v1224
  %v1317 = vpop.f32.mrb[0].mxu0
  %v1318 = vadd.f32 %v1215, %v1317
  %v1319 = vpop.f32.mrb[0].mxu0
  %1320 = vmatprep.mubr.f32.mxu0 0.0
  %1321 = vmatmul.mubr.f32.gmra.mrb[0].mxu0 %v1227
  %v1322 = vpop.f32.mrb[0].mxu0
  %v1323 = vadd.f32 %v1215, %v1322
  %v1324 = vpop.f32.mrb[0].mxu0
  %1325 = vmatprep.mubr.f32.mxu0 0.0
  %1326 = vmatmul.mubr.f32.gmra.mrb[0].mxu0 %v1230
  %v1327 = vpop.f32.mrb[0].mxu0
  %v1328 = vadd.f32 %v1215, %v1327
  %v1329 = vpop.f32.mrb[0].mxu0
  %1330 = vmatprep.mubr.f32.mxu0 0.0
  %1331 = vmatmul.mubr.f32.gmra.mrb[0].mxu0 %v1233
  %v1332 = vpop.f32.mrb[0].mxu0
  %v1333 = vadd.f32 %v1215, %v1332
  %v1334 = vpop.f32.mrb[0].mxu0
  %1335 = vmatprep.mubr.f32.mxu0 0.0
  %1336 = vmatmul.mubr.f32.gmra.mrb[0].mxu0 %v1236
  %v1337 = vpop.f32.mrb[0].mxu0
  %v1338 = vadd.f32 %v1215, %v1337
  %v1339 = vpop.f32.mrb[0].mxu0
  %1340 = vmatprep.mubr.f32.mxu0 0.0
  %1341 = vmatmul.mubr.f32.gmra.mrb[0].mxu0 %v1239
  %v1342 = vpop.f32.mrb[0].mxu0
  %v1343 = vadd.f32 %v1215, %v1342
  %v1344 = vpop.f32.mrb[0].mxu0
  %1345 = vdwg.mxu0
  %v1346 = vxor.u32 %v1308, 2147483648
  %v1347 = vxor.u32 %v1313, 2147483648
  %v1348 = vxor.u32 %v1318, 2147483648
  %v1349 = vxor.u32 %v1323, 2147483648
  %v1350 = vxor.u32 %v1328, 2147483648
  %v1351 = vxor.u32 %v1333, 2147483648
  %v1352 = vxor.u32 %v1338, 2147483648
  %v1353 = vxor.u32 %v1343, 2147483648
  %v1354 = vmul.f32 %v1346, 1.442695
  %v1355 = vpow.pop %v1354
  %v1356 = vmul.f32 %v1347, 1.442695
  %v1357 = vpow.pop %v1356
  %v1358 = vmul.f32 %v1348, 1.442695
  %v1359 = vpow.pop %v1358
  %v1360 = vmul.f32 %v1349, 1.442695
  %v1361 = vpow.pop %v1360
  %v1362 = vmul.f32 %v1350, 1.442695
  %v1363 = vpow.pop %v1362
  %v1364 = vmul.f32 %v1351, 1.442695
  %v1365 = vpow.pop %v1364
  %v1366 = vmul.f32 %v1352, 1.442695
  %v1367 = vpow.pop %v1366
  %v1368 = vmul.f32 %v1353, 1.442695
  %v1369 = vpow.pop %v1368
  %v1370 = vadd.f32 %v1355, 1.0
  %v1371 = vadd.f32 %v1357, 1.0
  %v1372 = vadd.f32 %v1359, 1.0
  %v1373 = vadd.f32 %v1361, 1.0
  %v1374 = vadd.f32 %v1363, 1.0
  %v1375 = vadd.f32 %v1365, 1.0
  %v1376 = vadd.f32 %v1367, 1.0
  %v1377 = vadd.f32 %v1369, 1.0
  %v1378 = vrcp.pop %v1370
  %v1379 = vmul.f32 1.0, %v1378
  %v1380 = vrcp.pop %v1371
  %v1381 = vmul.f32 1.0, %v1380
  %v1382 = vrcp.pop %v1372
  %v1383 = vmul.f32 1.0, %v1382
  %v1384 = vrcp.pop %v1373
  %v1385 = vmul.f32 1.0, %v1384
  %v1386 = vrcp.pop %v1374
  %v1387 = vmul.f32 1.0, %v1386
  %v1388 = vrcp.pop %v1375
  %v1389 = vmul.f32 1.0, %v1388
  %v1390 = vrcp.pop %v1376
  %v1391 = vmul.f32 1.0, %v1390
  %v1392 = vrcp.pop %v1377
  %v1393 = vmul.f32 1.0, %v1392
  %v1394 = vmax.f32 %v1308, 0.0
  %v1395 = vmax.f32 %v1313, 0.0
  %v1396 = vmax.f32 %v1318, 0.0
  %v1397 = vmax.f32 %v1323, 0.0
  %v1398 = vmax.f32 %v1328, 0.0
  %v1399 = vmax.f32 %v1333, 0.0
  %v1400 = vmax.f32 %v1338, 0.0
  %v1401 = vmax.f32 %v1343, 0.0
  %vm1402 = vcmp.ne.f32.partialorder %v1308, %v1308
  %vm1403 = vcmp.ne.f32.partialorder %v1313, %v1313
  %vm1404 = vcmp.ne.f32.partialorder %v1318, %v1318
  %vm1405 = vcmp.ne.f32.partialorder %v1323, %v1323
  %vm1406 = vcmp.ne.f32.partialorder %v1328, %v1328
  %vm1407 = vcmp.ne.f32.partialorder %v1333, %v1333
  %vm1408 = vcmp.ne.f32.partialorder %v1338, %v1338
  %vm1409 = vcmp.ne.f32.partialorder %v1343, %v1343
  %v1410 = vadd.f32 %v1308, 0.0
  %v1411 = vadd.f32 %v1313, 0.0
  %v1412 = vadd.f32 %v1318, 0.0
  %v1413 = vadd.f32 %v1323, 0.0
  %v1414 = vadd.f32 %v1328, 0.0
  %v1415 = vadd.f32 %v1333, 0.0
  %v1416 = vadd.f32 %v1338, 0.0
  %v1417 = vadd.f32 %v1343, 0.0
  %v1418 = vand.u32 2147483647, %v1308
  %v1419 = vand.u32 2147483647, %v1313
  %v1420 = vand.u32 2147483647, %v1318
  %v1421 = vand.u32 2147483647, %v1323
  %v1422 = vand.u32 2147483647, %v1328
  %v1423 = vand.u32 2147483647, %v1333
  %v1424 = vand.u32 2147483647, %v1338
  %v1425 = vand.u32 2147483647, %v1343
  %v1426 = vsub.f32 0.0, %v1418
  %v1427 = vsub.f32 0.0, %v1419
  %v1428 = vsub.f32 0.0, %v1420
  %v1429 = vsub.f32 0.0, %v1421
  %v1430 = vsub.f32 0.0, %v1422
  %v1431 = vsub.f32 0.0, %v1423
  %v1432 = vsub.f32 0.0, %v1424
  %v1433 = vsub.f32 0.0, %v1425
  %v1434 = vmul.f32 %v1426, 1.442695
  %v1435 = vpow.pop %v1434
  %v1436 = vmul.f32 %v1427, 1.442695
  %v1437 = vpow.pop %v1436
  %v1438 = vmul.f32 %v1428, 1.442695
  %v1439 = vpow.pop %v1438
  %v1440 = vmul.f32 %v1429, 1.442695
  %v1441 = vpow.pop %v1440
  %v1442 = vmul.f32 %v1430, 1.442695
  %v1443 = vpow.pop %v1442
  %v1444 = vmul.f32 %v1431, 1.442695
  %v1445 = vpow.pop %v1444
  %v1446 = vmul.f32 %v1432, 1.442695
  %v1447 = vpow.pop %v1446
  %v1448 = vmul.f32 %v1433, 1.442695
  %v1449 = vpow.pop %v1448
  %v1450 = vadd.f32 %v1435, 1.0
  %v1451 = vlog2.pop %v1450
  %v1452 = vmul.f32 %v1451, 0.6931472
  %v1453 = vmul.f32 -0.5, %v1435
  %v1454 = vadd.f32 %v1453, 1.0
  %v1455 = vmul.f32 %v1454, %v1435
  %v1456 = vand.u32 2147483647, %v1435
  %vm1457 = vcmp.lt.f32.partialorder %v1456, 0.0004427343
  %v1458 = vsel %vm1457, %v1455, %v1452
  %v1459 = vadd.f32 %v1437, 1.0
  %v1460 = vlog2.pop %v1459
  %v1461 = vmul.f32 %v1460, 0.6931472
  %v1462 = vmul.f32 -0.5, %v1437
  %v1463 = vadd.f32 %v1462, 1.0
  %v1464 = vmul.f32 %v1463, %v1437
  %v1465 = vand.u32 2147483647, %v1437
  %vm1466 = vcmp.lt.f32.partialorder %v1465, 0.0004427343
  %v1467 = vsel %vm1466, %v1464, %v1461
  %v1468 = vadd.f32 %v1439, 1.0
  %v1469 = vlog2.pop %v1468
  %v1470 = vmul.f32 %v1469, 0.6931472
  %v1471 = vmul.f32 -0.5, %v1439
  %v1472 = vadd.f32 %v1471, 1.0
  %v1473 = vmul.f32 %v1472, %v1439
  %v1474 = vand.u32 2147483647, %v1439
  %vm1475 = vcmp.lt.f32.partialorder %v1474, 0.0004427343
  %v1476 = vsel %vm1475, %v1473, %v1470
  %v1477 = vadd.f32 %v1441, 1.0
  %v1478 = vlog2.pop %v1477
  %v1479 = vmul.f32 %v1478, 0.6931472
  %v1480 = vmul.f32 -0.5, %v1441
  %v1481 = vadd.f32 %v1480, 1.0
  %v1482 = vmul.f32 %v1481, %v1441
  %v1483 = vand.u32 2147483647, %v1441
  %vm1484 = vcmp.lt.f32.partialorder %v1483, 0.0004427343
  %v1485 = vsel %vm1484, %v1482, %v1479
  %v1486 = vadd.f32 %v1443, 1.0
  %v1487 = vlog2.pop %v1486
  %v1488 = vmul.f32 %v1487, 0.6931472
  %v1489 = vmul.f32 -0.5, %v1443
  %v1490 = vadd.f32 %v1489, 1.0
  %v1491 = vmul.f32 %v1490, %v1443
  %v1492 = vand.u32 2147483647, %v1443
  %vm1493 = vcmp.lt.f32.partialorder %v1492, 0.0004427343
  %v1494 = vsel %vm1493, %v1491, %v1488
  %v1495 = vadd.f32 %v1445, 1.0
  %v1496 = vlog2.pop %v1495
  %v1497 = vmul.f32 %v1496, 0.6931472
  %v1498 = vmul.f32 -0.5, %v1445
  %v1499 = vadd.f32 %v1498, 1.0
  %v1500 = vmul.f32 %v1499, %v1445
  %v1501 = vand.u32 2147483647, %v1445
  %vm1502 = vcmp.lt.f32.partialorder %v1501, 0.0004427343
  %v1503 = vsel %vm1502, %v1500, %v1497
  %v1504 = vadd.f32 %v1447, 1.0
  %v1505 = vlog2.pop %v1504
  %v1506 = vmul.f32 %v1505, 0.6931472
  %v1507 = vmul.f32 -0.5, %v1447
  %v1508 = vadd.f32 %v1507, 1.0
  %v1509 = vmul.f32 %v1508, %v1447
  %v1510 = vand.u32 2147483647, %v1447
  %vm1511 = vcmp.lt.f32.partialorder %v1510, 0.0004427343
  %v1512 = vsel %vm1511, %v1509, %v1506
  %v1513 = vadd.f32 %v1449, 1.0
  %v1514 = vlog2.pop %v1513
  %v1515 = vmul.f32 %v1514, 0.6931472
  %v1516 = vmul.f32 -0.5, %v1449
  %v1517 = vadd.f32 %v1516, 1.0
  %v1518 = vmul.f32 %v1517, %v1449
  %v1519 = vand.u32 2147483647, %v1449
  %vm1520 = vcmp.lt.f32.partialorder %v1519, 0.0004427343
  %v1521 = vsel %vm1520, %v1518, %v1515
  %v1522 = vadd.f32 %v1394, %v1458
  %v1523 = vadd.f32 %v1395, %v1467
  %v1524 = vadd.f32 %v1396, %v1476
  %v1525 = vadd.f32 %v1397, %v1485
  %v1526 = vadd.f32 %v1398, %v1494
  %v1527 = vadd.f32 %v1399, %v1503
  %v1528 = vadd.f32 %v1400, %v1512
  %v1529 = vadd.f32 %v1401, %v1521
  %v1530 = vsel %vm1402, %v1410, %v1522
  %v1531 = vsel %vm1403, %v1411, %v1523
  %v1532 = vsel %vm1404, %v1412, %v1524
  %v1533 = vsel %vm1405, %v1413, %v1525
  %v1534 = vsel %vm1406, %v1414, %v1526
  %v1535 = vsel %vm1407, %v1415, %v1527
  %v1536 = vsel %vm1408, %v1416, %v1528
  %v1537 = vsel %vm1409, %v1417, %v1529
  %v1538 = vld [vmem:[%s1] sm:$0xff]
  %v1539 = vld [vmem:[%s1 + $0x8] sm:$0xff]
  %v1540 = vld [vmem:[%s1 + $0x10] sm:$0xff]
  %v1541 = vld [vmem:[%s1 + $0x18] sm:$0xff]
  %v1542 = vld [vmem:[%s1 + $0x20] sm:$0xff]
  %v1543 = vld [vmem:[%s1 + $0x28] sm:$0xff]
  %v1544 = vld [vmem:[%s1 + $0x30] sm:$0xff]
  %v1545 = vld [vmem:[%s1 + $0x38] sm:$0xff]
  %1554 = vrot.lane.b32.xlu0 %v1530, 112
  %v1555 = vpop.permute.xlu0 %1554
  %1556 = vrot.lane.b32.xlu0 %v1531, 112
  %v1557 = vpop.permute.xlu0 %1556
  %1558 = vrot.lane.b32.xlu0 %v1532, 112
  %v1559 = vpop.permute.xlu0 %1558
  %1560 = vrot.lane.b32.xlu0 %v1533, 112
  %v1561 = vpop.permute.xlu0 %1560
  %1562 = vrot.lane.b32.xlu0 %v1534, 112
  %v1563 = vpop.permute.xlu0 %1562
  %1564 = vrot.lane.b32.xlu0 %v1535, 112
  %v1565 = vpop.permute.xlu0 %1564
  %1566 = vrot.lane.b32.xlu0 %v1536, 112
  %v1567 = vpop.permute.xlu0 %1566
  %1568 = vrot.lane.b32.xlu0 %v1537, 112
  %v1569 = vpop.permute.xlu0 %1568
  %v1578 = vmul.f32 %v1538, %v1555
  %v1579 = vmul.f32 %v1539, %v1557
  %v1580 = vmul.f32 %v1540, %v1559
  %v1581 = vmul.f32 %v1541, %v1561
  %v1582 = vmul.f32 %v1542, %v1563
  %v1583 = vmul.f32 %v1543, %v1565
  %v1584 = vmul.f32 %v1544, %v1567
  %v1585 = vmul.f32 %v1545, %v1569
  %v1586 = vadd.f32 %v1578, %v1379
  %v1587 = vadd.f32 %v1579, %v1381
  %v1588 = vadd.f32 %v1580, %v1383
  %v1589 = vadd.f32 %v1581, %v1385
  %v1590 = vadd.f32 %v1582, %v1387
  %v1591 = vadd.f32 %v1583, %v1389
  %v1592 = vadd.f32 %v1584, %v1391
  %v1593 = vadd.f32 %v1585, %v1393
  %1602 = vrot.lane.b32.xlu0 %v1379, 16
  %v1603 = vpop.permute.xlu0 %1602
  %1604 = vrot.lane.b32.xlu0 %v1381, 16
  %v1605 = vpop.permute.xlu0 %1604
  %1606 = vrot.lane.b32.xlu0 %v1383, 16
  %v1607 = vpop.permute.xlu0 %1606
  %1608 = vrot.lane.b32.xlu0 %v1385, 16
  %v1609 = vpop.permute.xlu0 %1608
  %1610 = vrot.lane.b32.xlu0 %v1387, 16
  %v1611 = vpop.permute.xlu0 %1610
  %1612 = vrot.lane.b32.xlu0 %v1389, 16
  %v1613 = vpop.permute.xlu0 %1612
  %1614 = vrot.lane.b32.xlu0 %v1391, 16
  %v1615 = vpop.permute.xlu0 %1614
  %1616 = vrot.lane.b32.xlu0 %v1393, 16
  %v1617 = vpop.permute.xlu0 %1616
  %1626 = vrot.lane.b32.xlu0 %v1530, 16
  %v1627 = vpop.permute.xlu0 %1626
  %1628 = vrot.lane.b32.xlu0 %v1531, 16
  %v1629 = vpop.permute.xlu0 %1628
  %1630 = vrot.lane.b32.xlu0 %v1532, 16
  %v1631 = vpop.permute.xlu0 %1630
  %1632 = vrot.lane.b32.xlu0 %v1533, 16
  %v1633 = vpop.permute.xlu0 %1632
  %1634 = vrot.lane.b32.xlu0 %v1534, 16
  %v1635 = vpop.permute.xlu0 %1634
  %1636 = vrot.lane.b32.xlu0 %v1535, 16
  %v1637 = vpop.permute.xlu0 %1636
  %1638 = vrot.lane.b32.xlu0 %v1536, 16
  %v1639 = vpop.permute.xlu0 %1638
  %1640 = vrot.lane.b32.xlu0 %v1537, 16
  %v1641 = vpop.permute.xlu0 %1640
  %v1650 = vsel %vm52, %v1586, %v1603
  %v1651 = vsel %vm52, %v1587, %v1605
  %v1652 = vsel %vm52, %v1588, %v1607
  %v1653 = vsel %vm52, %v1589, %v1609
  %v1654 = vsel %vm52, %v1590, %v1611
  %v1655 = vsel %vm52, %v1591, %v1613
  %v1656 = vsel %vm52, %v1592, %v1615
  %v1657 = vsel %vm52, %v1593, %v1617
  %v1658 = vsel %vm203, %v1650, %v1627
  %v1659 = vsel %vm203, %v1651, %v1629
  %v1660 = vsel %vm203, %v1652, %v1631
  %v1661 = vsel %vm203, %v1653, %v1633
  %v1662 = vsel %vm203, %v1654, %v1635
  %v1663 = vsel %vm203, %v1655, %v1637
  %v1664 = vsel %vm203, %v1656, %v1639
  %v1665 = vsel %vm203, %v1657, %v1641
  %vm1666 = vcmask 392192
  %1667 = vst.msk [vmem:[%s10] sm:$0xff] %vm1666, %v1658
  %1668 = vst.msk [vmem:[%s10 + $0x8] sm:$0xff] %vm1666, %v1659
  %1669 = vst.msk [vmem:[%s10 + $0x10] sm:$0xff] %vm1666, %v1660
  %1670 = vst.msk [vmem:[%s10 + $0x18] sm:$0xff] %vm1666, %v1661
  %1671 = vst.msk [vmem:[%s10 + $0x20] sm:$0xff] %vm1666, %v1662
  %1672 = vst.msk [vmem:[%s10 + $0x28] sm:$0xff] %vm1666, %v1663
  %1673 = vst.msk [vmem:[%s10 + $0x30] sm:$0xff] %vm1666, %v1664
  %1674 = vst.msk [vmem:[%s10 + $0x38] sm:$0xff] %vm1666, %v1665
  // Predicated region
  $region42: #{tpu_custom_call.1} parent=0 // pred_check
    _
  $region43: #{tpu_custom_call.1} parent=0 // pred_check_branch
    %1676 = sbr.rel (0) target = $region45
  $region44: #{tpu_custom_call.1} parent=0 // pred_region
    _
  $region45: #{tpu_custom_call.1} parent=0 // pred_fallthru
    _
  // Predicated region
  $region46: #{tpu_custom_call.1} parent=0 // pred_check
    _
  $region47: #{tpu_custom_call.1} parent=0 // pred_check_branch
    %1678 = sbr.rel (0) target = $region49
  $region48: #{tpu_custom_call.1} parent=0 // pred_region
    _
  $region49: #{tpu_custom_call.1} parent=0 // pred_fallthru
    _

</llo_original>
